<compile_context>
chip_gen: v6e
topology: v6e:2x2x1
jax: 0.10.0
libtpu: 0.0.40
codegen_flags: <defaults>
</compile_context>

<pallas_src>
import functools

import jax
import jax.numpy as jnp
from jax import lax
from jax.experimental import pallas as pl
from jax.experimental.pallas import tpu as pltpu


# canonical 2-D contraction: lhs dim 1 with rhs dim 0
_DN2 = (((1,), (0,)), ((), ()))

# 3x3 tap order (dh, dw); must match _fuse_conv_weight's column-block order.
_TAPS = tuple((dh, dw) for dh in (-1, 0, 1) for dw in (-1, 0, 1))


def _rcab_kernel(x_ref, w1_ref, b1_ref, w2_ref, b2_ref,
                 wf1_ref, bf1_ref, wf2_ref, bf2_ref,
                 out_ref, xbuf_ref, *, H, W):
    # Block shapes:
    #   x/out (1, C, HW) f32; w1/w2 (C, 9C) bf16; b1/b2/bf2 (C, 1) f32;
    #   wf1 (Cr, C) f32; bf1 (Cr, 1) f32; wf2 (C, Cr) f32;
    #   xbuf scratch (9C, HW) bf16.
    C, HW = out_ref.shape[1], out_ref.shape[2]

    # Lane-index helpers for the SAME-padding edge masks (built once, shared
    # by both convs).  lane = h*W + w on the flattened spatial axis.
    lane = lax.broadcasted_iota(jnp.int32, (C, HW), 1)
    col = lane % W

    def tap_mask(dh, dw):
        conds = []
        if dw == -1:
            conds.append(col >= 1)            # needs source column w-1 >= 0
        elif dw == 1:
            conds.append(col <= W - 2)        # needs source column w+1 <= W-1
        if dh == -1:
            conds.append(lane >= W)           # needs source row h-1 >= 0
        elif dh == 1:
            conds.append(lane < (H - 1) * W)  # needs source row h+1 <= H-1
        if not conds:
            return None
        m = conds[0]
        for c in conds[1:]:
            m = jnp.logical_and(m, c)
        return m

    masks = {tap: tap_mask(*tap) for tap in _TAPS}

    def conv3x3(act_f32, w_ref, b_ref):
        # Stage the 9 rolled / zero-masked taps as one fused (9C, HW) bf16
        # operand.  Rolls go to the XLU, masks to the VPU (both have slack);
        # zeroing/identity of the taps is exact, so the only quantization is
        # the bf16 matmul-operand cast.
        for k, (dh, dw) in enumerate(_TAPS):
            d = dh * W + dw                    # want tap[p] = act[p + d]
            tap = act_f32 if d == 0 else pltpu.roll(act_f32, (-d) % HW, 1)
            m = masks[(dh, dw)]
            if m is not None:
                tap = jnp.where(m, tap, 0.0)
            xbuf_ref[pl.ds(k * C, C), :] = tap.astype(jnp.bfloat16)
        # Single K = 9C MXU contraction per conv, f32 accumulation.
        acc = lax.dot_general(w_ref[...], xbuf_ref[...], _DN2,
                              preferred_element_type=jnp.float32)
        return acc + b_ref[...]

    # ---- body: conv1 -> ReLU -> conv2 ----
    y1 = jnp.maximum(conv3x3(x_ref[0], w1_ref, b1_ref), 0.0)
    y2 = conv3x3(y1, w2_ref, b2_ref)                           # (C, HW) f32

    # ---- channel attention (CALayer): reduce BEFORE the 1x1 matmuls ----
    pooled = jnp.sum(y2, axis=1, keepdims=True) * (1.0 / HW)   # (C, 1)
    h1 = lax.dot_general(wf1_ref[...], pooled, _DN2,
                         preferred_element_type=jnp.float32) + bf1_ref[...]
    h1 = jnp.maximum(h1, 0.0)                                  # (Cr, 1)
    h2 = lax.dot_general(wf2_ref[...], h1, _DN2,
                         preferred_element_type=jnp.float32) + bf2_ref[...]
    scale = jax.nn.sigmoid(h2)                                 # (C, 1)

    # TODO(synk): nn.Dropout2d(0.1) is identity in eval/inference mode; the
    # training-mode stochastic channel dropout is not implemented here.

    # channel-wise scale + residual (re-read x, not pinned live above);
    # single lane-dense (unmasked) store.
    out_ref[0] = y2 * scale + x_ref[0]


def _fuse_conv_weight(w_oihw):
    """PyTorch (Cout, Cin, 3, 3) conv weight -> (Cout, 9*Cin) bf16 with column
    blocks ordered (kh, kw) row-major to match the fused tap operand."""
    cols = [w_oihw[:, :, kh, kw] for kh in range(3) for kw in range(3)]
    return jnp.concatenate(cols, axis=1).astype(jnp.bfloat16)


def rcab_forward(x_nchw, params):
    """RCAB forward, eval/inference mode (Dropout2d is identity).

    x_nchw: (N, C, H, W) float32 in PyTorch layout; params in PyTorch layouts.
    """
    w1, b1, w2, b2, wf1, bf1, wf2, bf2 = params
    N, C, H, W = x_nchw.shape
    HW = H * W
    Cr = wf1.shape[0]

    # Flatten H*W onto the lane axis; free for contiguous NCHW.
    x_flat = x_nchw.reshape(N, C, HW)

    w1f = _fuse_conv_weight(w1)
    w2f = _fuse_conv_weight(w2)
    b1c = b1.reshape(C, 1).astype(jnp.float32)
    b2c = b2.reshape(C, 1).astype(jnp.float32)
    wf1c = wf1.astype(jnp.float32)
    bf1c = bf1.reshape(Cr, 1).astype(jnp.float32)
    wf2c = wf2.astype(jnp.float32)
    bf2c = bf2.reshape(C, 1).astype(jnp.float32)

    kernel = functools.partial(_rcab_kernel, H=H, W=W)

    out_flat = pl.pallas_call(
        kernel,
        out_shape=jax.ShapeDtypeStruct((N, C, HW), jnp.float32),
        grid_spec=pltpu.PrefetchScalarGridSpec(
            num_scalar_prefetch=0,
            grid=(N,),
            in_specs=[
                pl.BlockSpec((1, C, HW), lambda b: (b, 0, 0)),     # x
                pl.BlockSpec((C, 9 * C), lambda b: (0, 0)),        # conv1 w
                pl.BlockSpec((C, 1), lambda b: (0, 0)),            # conv1 b
                pl.BlockSpec((C, 9 * C), lambda b: (0, 0)),        # conv2 w
                pl.BlockSpec((C, 1), lambda b: (0, 0)),            # conv2 b
                pl.BlockSpec((Cr, C), lambda b: (0, 0)),           # fc1 w
                pl.BlockSpec((Cr, 1), lambda b: (0, 0)),           # fc1 b
                pl.BlockSpec((C, Cr), lambda b: (0, 0)),           # fc2 w
                pl.BlockSpec((C, 1), lambda b: (0, 0)),            # fc2 b
            ],
            out_specs=pl.BlockSpec((1, C, HW), lambda b: (b, 0, 0)),
            scratch_shapes=[pltpu.VMEM((9 * C, HW), jnp.bfloat16)],
        ),
        compiler_params=pltpu.CompilerParams(
            dimension_semantics=("parallel",)),
    )(x_flat, w1f, b1c, w2f, b2c, wf1c, bf1c, wf2c, bf2c)

    return out_flat.reshape(N, C, H, W)


def rcab_reference(x, params):
    """Pure-JAX reference (eval mode, f32 HIGHEST precision), NCHW layout."""
    w1, b1, w2, b2, wf1, bf1, wf2, bf2 = params
    dn = lax.conv_dimension_numbers(x.shape, w1.shape, ('NCHW', 'OIHW', 'NCHW'))
    y1 = lax.conv_general_dilated(x, w1, (1, 1), 'SAME', dimension_numbers=dn,
                                  precision=lax.Precision.HIGHEST)
    y1 = jnp.maximum(y1 + b1.reshape(1, -1, 1, 1), 0.0)
    y2 = lax.conv_general_dilated(y1, w2, (1, 1), 'SAME', dimension_numbers=dn,
                                  precision=lax.Precision.HIGHEST)
    y2 = y2 + b2.reshape(1, -1, 1, 1)
    pooled = jnp.mean(y2, axis=(2, 3))                     # (N, C)
    h1 = jnp.maximum(pooled @ wf1.T + bf1.reshape(1, -1), 0.0)
    h2 = h1 @ wf2.T + bf2.reshape(1, -1)
    scale = jax.nn.sigmoid(h2)[:, :, None, None]
    return y2 * scale + x


def make_params(key, channel, reduction=16):
    """Parameters in PyTorch layouts: conv (Cout, Cin, 3, 3) + (Cout,),
    1x1 convs as (Cr, C)/(Cr,) and (C, Cr)/(C,)."""
    cr = max(channel // reduction, 1)
    ks = jax.random.split(key, 8)
    w1 = 0.1 * jax.random.normal(ks[0], (channel, channel, 3, 3), jnp.float32)
    b1 = 0.01 * jax.random.normal(ks[1], (channel,), jnp.float32)
    w2 = 0.1 * jax.random.normal(ks[2], (channel, channel, 3, 3), jnp.float32)
    b2 = 0.01 * jax.random.normal(ks[3], (channel,), jnp.float32)
    wf1 = 0.1 * jax.random.normal(ks[4], (cr, channel), jnp.float32)
    bf1 = 0.01 * jax.random.normal(ks[5], (cr,), jnp.float32)
    wf2 = 0.1 * jax.random.normal(ks[6], (channel, cr), jnp.float32)
    bf2 = 0.01 * jax.random.normal(ks[7], (channel,), jnp.float32)
    return (w1, b1, w2, b2, wf1, bf1, wf2, bf2)


if __name__ == "__main__":
    N, C, H, W = 2, 32, 16, 16        # channel=32 so channel // 16 = 2 in CALayer
    key = jax.random.PRNGKey(0)
    pkey, xkey = jax.random.split(key)
    params = make_params(pkey, C, reduction=16)
    x = jax.random.normal(xkey, (N, C, H, W), jnp.float32)

    out = jax.block_until_ready(rcab_forward(x, params))
    ref = jax.block_until_ready(rcab_reference(x, params))

    assert out.shape == (N, C, H, W)
    max_err = float(jnp.max(jnp.abs(out - ref)))
    assert max_err < 5e-2, f"mismatch vs reference: max abs err {max_err}"
    print("KERNEL_OK")
</pallas_src>

<mosaic_0001>
module attributes {stable_mosaic.version = 11 : i64} {
  func.func @_rcab_kernel(%arg0: i32, %arg1: memref<1x32x256xf32, #tpu.memory_space<vmem>>, %arg2: memref<32x288xbf16, #tpu.memory_space<vmem>>, %arg3: memref<32x1xf32, #tpu.memory_space<vmem>>, %arg4: memref<32x288xbf16, #tpu.memory_space<vmem>>, %arg5: memref<32x1xf32, #tpu.memory_space<vmem>>, %arg6: memref<2x32xf32, #tpu.memory_space<vmem>>, %arg7: memref<2x1xf32, #tpu.memory_space<vmem>>, %arg8: memref<32x2xf32, #tpu.memory_space<vmem>>, %arg9: memref<32x1xf32, #tpu.memory_space<vmem>>, %arg10: memref<1x32x256xf32, #tpu.memory_space<vmem>>, %arg11: memref<288x256xbf16, #tpu.memory_space<vmem>>) attributes {dimension_semantics = [#tpu.dimension_semantics<parallel>], iteration_bounds = array<i64: 2>, scalar_prefetch = 0 : i64, scratch_operands = 1 : i64, tpu.core_type = #tpu.core_type<tc>, window_params = [{transform_indices = @transform_0, window_bounds = array<i64: 1, 32, 256>}, {pipeline_mode = #tpu.pipeline_mode<synchronous>, transform_indices = @transform_1, window_bounds = array<i64: 32, 288>}, {pipeline_mode = #tpu.pipeline_mode<synchronous>, transform_indices = @transform_2, window_bounds = array<i64: 32, 1>}, {pipeline_mode = #tpu.pipeline_mode<synchronous>, transform_indices = @transform_3, window_bounds = array<i64: 32, 288>}, {pipeline_mode = #tpu.pipeline_mode<synchronous>, transform_indices = @transform_4, window_bounds = array<i64: 32, 1>}, {pipeline_mode = #tpu.pipeline_mode<synchronous>, transform_indices = @transform_5, window_bounds = array<i64: 2, 32>}, {pipeline_mode = #tpu.pipeline_mode<synchronous>, transform_indices = @transform_6, window_bounds = array<i64: 2, 1>}, {pipeline_mode = #tpu.pipeline_mode<synchronous>, transform_indices = @transform_7, window_bounds = array<i64: 32, 2>}, {pipeline_mode = #tpu.pipeline_mode<synchronous>, transform_indices = @transform_8, window_bounds = array<i64: 32, 1>}, {transform_indices = @transform_9, window_bounds = array<i64: 1, 32, 256>}]} {
    %0 = tpu.iota {dimensions = array<i32: 1>} : vector<32x256xi32>
    %c16_i32 = arith.constant 16 : i32
    %c0_i32 = arith.constant 0 : i32
    %1 = arith.cmpi eq, %c16_i32, %c0_i32 : i32
    %c1_i32 = arith.constant 1 : i32
    %2 = arith.select %1, %c1_i32, %c16_i32 : i32
    %3 = vector.broadcast %2 : i32 to vector<32x256xi32>
    %4 = arith.remsi %0, %3 : vector<32x256xi32>
    %c0_i32_0 = arith.constant 0 : i32
    %5 = vector.broadcast %c0_i32_0 : i32 to vector<32x256xi32>
    %6 = arith.cmpi ne, %4, %5 : vector<32x256xi32>
    %c0_i32_1 = arith.constant 0 : i32
    %7 = vector.broadcast %c0_i32_1 : i32 to vector<32x256xi32>
    %8 = arith.cmpi slt, %4, %7 : vector<32x256xi32>
    %c0_i32_2 = arith.constant 0 : i32
    %9 = arith.cmpi slt, %2, %c0_i32_2 : i32
    %10 = vector.broadcast %9 : i1 to vector<32x256xi1>
    %11 = vector.broadcast %10 : vector<32x256xi1> to vector<32x256xi1>
    %12 = arith.xori %8, %11 : vector<32x256xi1>
    %13 = arith.andi %12, %6 : vector<32x256xi1>
    %14 = vector.broadcast %2 : i32 to vector<32x256xi32>
    %15 = arith.addi %4, %14 : vector<32x256xi32>
    %16 = arith.select %13, %15, %4 : vector<32x256xi1>, vector<32x256xi32>
    %c1_i32_3 = arith.constant 1 : i32
    %17 = vector.broadcast %c1_i32_3 : i32 to vector<32x256xi32>
    %18 = arith.cmpi sge, %16, %17 : vector<32x256xi32>
    %c16_i32_4 = arith.constant 16 : i32
    %19 = vector.broadcast %c16_i32_4 : i32 to vector<32x256xi32>
    %20 = arith.cmpi sge, %0, %19 : vector<32x256xi32>
    %21 = arith.andi %18, %20 : vector<32x256xi1>
    %c16_i32_5 = arith.constant 16 : i32
    %22 = vector.broadcast %c16_i32_5 : i32 to vector<32x256xi32>
    %23 = arith.cmpi sge, %0, %22 : vector<32x256xi32>
    %c14_i32 = arith.constant 14 : i32
    %24 = vector.broadcast %c14_i32 : i32 to vector<32x256xi32>
    %25 = arith.cmpi sle, %16, %24 : vector<32x256xi32>
    %c16_i32_6 = arith.constant 16 : i32
    %26 = vector.broadcast %c16_i32_6 : i32 to vector<32x256xi32>
    %27 = arith.cmpi sge, %0, %26 : vector<32x256xi32>
    %28 = arith.andi %25, %27 : vector<32x256xi1>
    %c1_i32_7 = arith.constant 1 : i32
    %29 = vector.broadcast %c1_i32_7 : i32 to vector<32x256xi32>
    %30 = arith.cmpi sge, %16, %29 : vector<32x256xi32>
    %c14_i32_8 = arith.constant 14 : i32
    %31 = vector.broadcast %c14_i32_8 : i32 to vector<32x256xi32>
    %32 = arith.cmpi sle, %16, %31 : vector<32x256xi32>
    %c1_i32_9 = arith.constant 1 : i32
    %33 = vector.broadcast %c1_i32_9 : i32 to vector<32x256xi32>
    %34 = arith.cmpi sge, %16, %33 : vector<32x256xi32>
    %c240_i32 = arith.constant 240 : i32
    %35 = vector.broadcast %c240_i32 : i32 to vector<32x256xi32>
    %36 = arith.cmpi slt, %0, %35 : vector<32x256xi32>
    %37 = arith.andi %34, %36 : vector<32x256xi1>
    %c240_i32_10 = arith.constant 240 : i32
    %38 = vector.broadcast %c240_i32_10 : i32 to vector<32x256xi32>
    %39 = arith.cmpi slt, %0, %38 : vector<32x256xi32>
    %c14_i32_11 = arith.constant 14 : i32
    %40 = vector.broadcast %c14_i32_11 : i32 to vector<32x256xi32>
    %41 = arith.cmpi sle, %16, %40 : vector<32x256xi32>
    %c240_i32_12 = arith.constant 240 : i32
    %42 = vector.broadcast %c240_i32_12 : i32 to vector<32x256xi32>
    %43 = arith.cmpi slt, %0, %42 : vector<32x256xi32>
    %44 = arith.andi %41, %43 : vector<32x256xi1>
    %c0 = arith.constant 0 : index
    %c0_13 = arith.constant 0 : index
    %c0_14 = arith.constant 0 : index
    %45 = vector.load %arg1[%c0, %c0_13, %c0_14] : memref<1x32x256xf32, #tpu.memory_space<vmem>>, vector<1x32x256xf32>
    %46 = vector.shape_cast %45 : vector<1x32x256xf32> to vector<32x256xf32>
    %c17_i32 = arith.constant 17 : i32
    %47 = tpu.dynamic_rotate %46 by %c17_i32 dim 1 : vector<32x256xf32>, i32 -> vector<32x256xf32>
    %cst = arith.constant 0.000000e+00 : f32
    %48 = vector.broadcast %cst : f32 to vector<32x256xf32>
    %49 = arith.select %21, %47, %48 : vector<32x256xi1>, vector<32x256xf32>
    %50 = arith.truncf %49 : vector<32x256xf32> to vector<32x256xbf16>
    %c0_15 = arith.constant 0 : index
    %c0_16 = arith.constant 0 : index
    %51 = vector.load %arg11[%c0_15, %c0_16] : memref<288x256xbf16, #tpu.memory_space<vmem>>, vector<32x256xbf16>
    tpu.vector_store %arg11[%c0_15, %c0_16], %50 {strides = array<i32>} : memref<288x256xbf16, #tpu.memory_space<vmem>>, vector<32x256xbf16>,
    %c16_i32_17 = arith.constant 16 : i32
    %52 = tpu.dynamic_rotate %46 by %c16_i32_17 dim 1 : vector<32x256xf32>, i32 -> vector<32x256xf32>
    %cst_18 = arith.constant 0.000000e+00 : f32
    %53 = vector.broadcast %cst_18 : f32 to vector<32x256xf32>
    %54 = arith.select %23, %52, %53 : vector<32x256xi1>, vector<32x256xf32>
    %55 = arith.truncf %54 : vector<32x256xf32> to vector<32x256xbf16>
    %c32 = arith.constant 32 : index
    %c0_19 = arith.constant 0 : index
    %56 = vector.load %arg11[%c32, %c0_19] : memref<288x256xbf16, #tpu.memory_space<vmem>>, vector<32x256xbf16>
    tpu.vector_store %arg11[%c32, %c0_19], %55 {strides = array<i32>} : memref<288x256xbf16, #tpu.memory_space<vmem>>, vector<32x256xbf16>,
    %c15_i32 = arith.constant 15 : i32
    %57 = tpu.dynamic_rotate %46 by %c15_i32 dim 1 : vector<32x256xf32>, i32 -> vector<32x256xf32>
    %cst_20 = arith.constant 0.000000e+00 : f32
    %58 = vector.broadcast %cst_20 : f32 to vector<32x256xf32>
    %59 = arith.select %28, %57, %58 : vector<32x256xi1>, vector<32x256xf32>
    %60 = arith.truncf %59 : vector<32x256xf32> to vector<32x256xbf16>
    %c64 = arith.constant 64 : index
    %c0_21 = arith.constant 0 : index
    %61 = vector.load %arg11[%c64, %c0_21] : memref<288x256xbf16, #tpu.memory_space<vmem>>, vector<32x256xbf16>
    tpu.vector_store %arg11[%c64, %c0_21], %60 {strides = array<i32>} : memref<288x256xbf16, #tpu.memory_space<vmem>>, vector<32x256xbf16>,
    %c1_i32_22 = arith.constant 1 : i32
    %62 = tpu.dynamic_rotate %46 by %c1_i32_22 dim 1 : vector<32x256xf32>, i32 -> vector<32x256xf32>
    %cst_23 = arith.constant 0.000000e+00 : f32
    %63 = vector.broadcast %cst_23 : f32 to vector<32x256xf32>
    %64 = arith.select %30, %62, %63 : vector<32x256xi1>, vector<32x256xf32>
    %65 = arith.truncf %64 : vector<32x256xf32> to vector<32x256xbf16>
    %c96 = arith.constant 96 : index
    %c0_24 = arith.constant 0 : index
    %66 = vector.load %arg11[%c96, %c0_24] : memref<288x256xbf16, #tpu.memory_space<vmem>>, vector<32x256xbf16>
    tpu.vector_store %arg11[%c96, %c0_24], %65 {strides = array<i32>} : memref<288x256xbf16, #tpu.memory_space<vmem>>, vector<32x256xbf16>,
    %67 = arith.truncf %46 : vector<32x256xf32> to vector<32x256xbf16>
    %c128 = arith.constant 128 : index
    %c0_25 = arith.constant 0 : index
    %68 = vector.load %arg11[%c128, %c0_25] : memref<288x256xbf16, #tpu.memory_space<vmem>>, vector<32x256xbf16>
    tpu.vector_store %arg11[%c128, %c0_25], %67 {strides = array<i32>} : memref<288x256xbf16, #tpu.memory_space<vmem>>, vector<32x256xbf16>,
    %c255_i32 = arith.constant 255 : i32
    %69 = tpu.dynamic_rotate %46 by %c255_i32 dim 1 : vector<32x256xf32>, i32 -> vector<32x256xf32>
    %cst_26 = arith.constant 0.000000e+00 : f32
    %70 = vector.broadcast %cst_26 : f32 to vector<32x256xf32>
    %71 = arith.select %32, %69, %70 : vector<32x256xi1>, vector<32x256xf32>
    %72 = arith.truncf %71 : vector<32x256xf32> to vector<32x256xbf16>
    %c160 = arith.constant 160 : index
    %c0_27 = arith.constant 0 : index
    %73 = vector.load %arg11[%c160, %c0_27] : memref<288x256xbf16, #tpu.memory_space<vmem>>, vector<32x256xbf16>
    tpu.vector_store %arg11[%c160, %c0_27], %72 {strides = array<i32>} : memref<288x256xbf16, #tpu.memory_space<vmem>>, vector<32x256xbf16>,
    %c241_i32 = arith.constant 241 : i32
    %74 = tpu.dynamic_rotate %46 by %c241_i32 dim 1 : vector<32x256xf32>, i32 -> vector<32x256xf32>
    %cst_28 = arith.constant 0.000000e+00 : f32
    %75 = vector.broadcast %cst_28 : f32 to vector<32x256xf32>
    %76 = arith.select %37, %74, %75 : vector<32x256xi1>, vector<32x256xf32>
    %77 = arith.truncf %76 : vector<32x256xf32> to vector<32x256xbf16>
    %c192 = arith.constant 192 : index
    %c0_29 = arith.constant 0 : index
    %78 = vector.load %arg11[%c192, %c0_29] : memref<288x256xbf16, #tpu.memory_space<vmem>>, vector<32x256xbf16>
    tpu.vector_store %arg11[%c192, %c0_29], %77 {strides = array<i32>} : memref<288x256xbf16, #tpu.memory_space<vmem>>, vector<32x256xbf16>,
    %c240_i32_30 = arith.constant 240 : i32
    %79 = tpu.dynamic_rotate %46 by %c240_i32_30 dim 1 : vector<32x256xf32>, i32 -> vector<32x256xf32>
    %cst_31 = arith.constant 0.000000e+00 : f32
    %80 = vector.broadcast %cst_31 : f32 to vector<32x256xf32>
    %81 = arith.select %39, %79, %80 : vector<32x256xi1>, vector<32x256xf32>
    %82 = arith.truncf %81 : vector<32x256xf32> to vector<32x256xbf16>
    %c224 = arith.constant 224 : index
    %c0_32 = arith.constant 0 : index
    %83 = vector.load %arg11[%c224, %c0_32] : memref<288x256xbf16, #tpu.memory_space<vmem>>, vector<32x256xbf16>
    tpu.vector_store %arg11[%c224, %c0_32], %82 {strides = array<i32>} : memref<288x256xbf16, #tpu.memory_space<vmem>>, vector<32x256xbf16>,
    %c239_i32 = arith.constant 239 : i32
    %84 = tpu.dynamic_rotate %46 by %c239_i32 dim 1 : vector<32x256xf32>, i32 -> vector<32x256xf32>
    %cst_33 = arith.constant 0.000000e+00 : f32
    %85 = vector.broadcast %cst_33 : f32 to vector<32x256xf32>
    %86 = arith.select %44, %84, %85 : vector<32x256xi1>, vector<32x256xf32>
    %87 = arith.truncf %86 : vector<32x256xf32> to vector<32x256xbf16>
    %c256 = arith.constant 256 : index
    %c0_34 = arith.constant 0 : index
    %88 = vector.load %arg11[%c256, %c0_34] : memref<288x256xbf16, #tpu.memory_space<vmem>>, vector<32x256xbf16>
    tpu.vector_store %arg11[%c256, %c0_34], %87 {strides = array<i32>} : memref<288x256xbf16, #tpu.memory_space<vmem>>, vector<32x256xbf16>,
    %c0_35 = arith.constant 0 : index
    %c0_36 = arith.constant 0 : index
    %89 = vector.load %arg2[%c0_35, %c0_36] : memref<32x288xbf16, #tpu.memory_space<vmem>>, vector<32x288xbf16>
    %c0_37 = arith.constant 0 : index
    %c0_38 = arith.constant 0 : index
    %90 = vector.load %arg11[%c0_37, %c0_38] : memref<288x256xbf16, #tpu.memory_space<vmem>>, vector<288x256xbf16>
    %cst_39 = arith.constant dense<0.000000e+00> : vector<32x256xf32>
    %91 = tpu.matmul %89, %90, %cst_39 {dimension_numbers = #tpu.dot_dimension_numbers<[1], [0], [0], [1], [0, 0, 1, 1], [], []>} : vector<32x288xbf16>, vector<288x256xbf16>, vector<32x256xf32> -> vector<32x256xf32>
    %c0_40 = arith.constant 0 : index
    %c0_41 = arith.constant 0 : index
    %92 = vector.load %arg3[%c0_40, %c0_41] : memref<32x1xf32, #tpu.memory_space<vmem>>, vector<32x1xf32>
    %93 = vector.broadcast %92 : vector<32x1xf32> to vector<32x256xf32>
    %94 = arith.addf %91, %93 : vector<32x256xf32>
    %cst_42 = arith.constant 0.000000e+00 : f32
    %95 = vector.broadcast %cst_42 : f32 to vector<32x256xf32>
    %96 = arith.maximumf %94, %95 : vector<32x256xf32>
    %c17_i32_43 = arith.constant 17 : i32
    %97 = tpu.dynamic_rotate %96 by %c17_i32_43 dim 1 : vector<32x256xf32>, i32 -> vector<32x256xf32>
    %cst_44 = arith.constant 0.000000e+00 : f32
    %98 = vector.broadcast %cst_44 : f32 to vector<32x256xf32>
    %99 = arith.select %21, %97, %98 : vector<32x256xi1>, vector<32x256xf32>
    %100 = arith.truncf %99 : vector<32x256xf32> to vector<32x256xbf16>
    %c0_45 = arith.constant 0 : index
    %c0_46 = arith.constant 0 : index
    %101 = vector.load %arg11[%c0_45, %c0_46] : memref<288x256xbf16, #tpu.memory_space<vmem>>, vector<32x256xbf16>
    tpu.vector_store %arg11[%c0_45, %c0_46], %100 {strides = array<i32>} : memref<288x256xbf16, #tpu.memory_space<vmem>>, vector<32x256xbf16>,
    %c16_i32_47 = arith.constant 16 : i32
    %102 = tpu.dynamic_rotate %96 by %c16_i32_47 dim 1 : vector<32x256xf32>, i32 -> vector<32x256xf32>
    %cst_48 = arith.constant 0.000000e+00 : f32
    %103 = vector.broadcast %cst_48 : f32 to vector<32x256xf32>
    %104 = arith.select %23, %102, %103 : vector<32x256xi1>, vector<32x256xf32>
    %105 = arith.truncf %104 : vector<32x256xf32> to vector<32x256xbf16>
    %c32_49 = arith.constant 32 : index
    %c0_50 = arith.constant 0 : index
    %106 = vector.load %arg11[%c32_49, %c0_50] : memref<288x256xbf16, #tpu.memory_space<vmem>>, vector<32x256xbf16>
    tpu.vector_store %arg11[%c32_49, %c0_50], %105 {strides = array<i32>} : memref<288x256xbf16, #tpu.memory_space<vmem>>, vector<32x256xbf16>,
    %c15_i32_51 = arith.constant 15 : i32
    %107 = tpu.dynamic_rotate %96 by %c15_i32_51 dim 1 : vector<32x256xf32>, i32 -> vector<32x256xf32>
    %cst_52 = arith.constant 0.000000e+00 : f32
    %108 = vector.broadcast %cst_52 : f32 to vector<32x256xf32>
    %109 = arith.select %28, %107, %108 : vector<32x256xi1>, vector<32x256xf32>
    %110 = arith.truncf %109 : vector<32x256xf32> to vector<32x256xbf16>
    %c64_53 = arith.constant 64 : index
    %c0_54 = arith.constant 0 : index
    %111 = vector.load %arg11[%c64_53, %c0_54] : memref<288x256xbf16, #tpu.memory_space<vmem>>, vector<32x256xbf16>
    tpu.vector_store %arg11[%c64_53, %c0_54], %110 {strides = array<i32>} : memref<288x256xbf16, #tpu.memory_space<vmem>>, vector<32x256xbf16>,
    %c1_i32_55 = arith.constant 1 : i32
    %112 = tpu.dynamic_rotate %96 by %c1_i32_55 dim 1 : vector<32x256xf32>, i32 -> vector<32x256xf32>
    %cst_56 = arith.constant 0.000000e+00 : f32
    %113 = vector.broadcast %cst_56 : f32 to vector<32x256xf32>
    %114 = arith.select %30, %112, %113 : vector<32x256xi1>, vector<32x256xf32>
    %115 = arith.truncf %114 : vector<32x256xf32> to vector<32x256xbf16>
    %c96_57 = arith.constant 96 : index
    %c0_58 = arith.constant 0 : index
    %116 = vector.load %arg11[%c96_57, %c0_58] : memref<288x256xbf16, #tpu.memory_space<vmem>>, vector<32x256xbf16>
    tpu.vector_store %arg11[%c96_57, %c0_58], %115 {strides = array<i32>} : memref<288x256xbf16, #tpu.memory_space<vmem>>, vector<32x256xbf16>,
    %117 = arith.truncf %96 : vector<32x256xf32> to vector<32x256xbf16>
    %c128_59 = arith.constant 128 : index
    %c0_60 = arith.constant 0 : index
    %118 = vector.load %arg11[%c128_59, %c0_60] : memref<288x256xbf16, #tpu.memory_space<vmem>>, vector<32x256xbf16>
    tpu.vector_store %arg11[%c128_59, %c0_60], %117 {strides = array<i32>} : memref<288x256xbf16, #tpu.memory_space<vmem>>, vector<32x256xbf16>,
    %c255_i32_61 = arith.constant 255 : i32
    %119 = tpu.dynamic_rotate %96 by %c255_i32_61 dim 1 : vector<32x256xf32>, i32 -> vector<32x256xf32>
    %cst_62 = arith.constant 0.000000e+00 : f32
    %120 = vector.broadcast %cst_62 : f32 to vector<32x256xf32>
    %121 = arith.select %32, %119, %120 : vector<32x256xi1>, vector<32x256xf32>
    %122 = arith.truncf %121 : vector<32x256xf32> to vector<32x256xbf16>
    %c160_63 = arith.constant 160 : index
    %c0_64 = arith.constant 0 : index
    %123 = vector.load %arg11[%c160_63, %c0_64] : memref<288x256xbf16, #tpu.memory_space<vmem>>, vector<32x256xbf16>
    tpu.vector_store %arg11[%c160_63, %c0_64], %122 {strides = array<i32>} : memref<288x256xbf16, #tpu.memory_space<vmem>>, vector<32x256xbf16>,
    %c241_i32_65 = arith.constant 241 : i32
    %124 = tpu.dynamic_rotate %96 by %c241_i32_65 dim 1 : vector<32x256xf32>, i32 -> vector<32x256xf32>
    %cst_66 = arith.constant 0.000000e+00 : f32
    %125 = vector.broadcast %cst_66 : f32 to vector<32x256xf32>
    %126 = arith.select %37, %124, %125 : vector<32x256xi1>, vector<32x256xf32>
    %127 = arith.truncf %126 : vector<32x256xf32> to vector<32x256xbf16>
    %c192_67 = arith.constant 192 : index
    %c0_68 = arith.constant 0 : index
    %128 = vector.load %arg11[%c192_67, %c0_68] : memref<288x256xbf16, #tpu.memory_space<vmem>>, vector<32x256xbf16>
    tpu.vector_store %arg11[%c192_67, %c0_68], %127 {strides = array<i32>} : memref<288x256xbf16, #tpu.memory_space<vmem>>, vector<32x256xbf16>,
    %c240_i32_69 = arith.constant 240 : i32
    %129 = tpu.dynamic_rotate %96 by %c240_i32_69 dim 1 : vector<32x256xf32>, i32 -> vector<32x256xf32>
    %cst_70 = arith.constant 0.000000e+00 : f32
    %130 = vector.broadcast %cst_70 : f32 to vector<32x256xf32>
    %131 = arith.select %39, %129, %130 : vector<32x256xi1>, vector<32x256xf32>
    %132 = arith.truncf %131 : vector<32x256xf32> to vector<32x256xbf16>
    %c224_71 = arith.constant 224 : index
    %c0_72 = arith.constant 0 : index
    %133 = vector.load %arg11[%c224_71, %c0_72] : memref<288x256xbf16, #tpu.memory_space<vmem>>, vector<32x256xbf16>
    tpu.vector_store %arg11[%c224_71, %c0_72], %132 {strides = array<i32>} : memref<288x256xbf16, #tpu.memory_space<vmem>>, vector<32x256xbf16>,
    %c239_i32_73 = arith.constant 239 : i32
    %134 = tpu.dynamic_rotate %96 by %c239_i32_73 dim 1 : vector<32x256xf32>, i32 -> vector<32x256xf32>
    %cst_74 = arith.constant 0.000000e+00 : f32
    %135 = vector.broadcast %cst_74 : f32 to vector<32x256xf32>
    %136 = arith.select %44, %134, %135 : vector<32x256xi1>, vector<32x256xf32>
    %137 = arith.truncf %136 : vector<32x256xf32> to vector<32x256xbf16>
    %c256_75 = arith.constant 256 : index
    %c0_76 = arith.constant 0 : index
    %138 = vector.load %arg11[%c256_75, %c0_76] : memref<288x256xbf16, #tpu.memory_space<vmem>>, vector<32x256xbf16>
    tpu.vector_store %arg11[%c256_75, %c0_76], %137 {strides = array<i32>} : memref<288x256xbf16, #tpu.memory_space<vmem>>, vector<32x256xbf16>,
    %c0_77 = arith.constant 0 : index
    %c0_78 = arith.constant 0 : index
    %139 = vector.load %arg4[%c0_77, %c0_78] : memref<32x288xbf16, #tpu.memory_space<vmem>>, vector<32x288xbf16>
    %c0_79 = arith.constant 0 : index
    %c0_80 = arith.constant 0 : index
    %140 = vector.load %arg11[%c0_79, %c0_80] : memref<288x256xbf16, #tpu.memory_space<vmem>>, vector<288x256xbf16>
    %cst_81 = arith.constant dense<0.000000e+00> : vector<32x256xf32>
    %141 = tpu.matmul %139, %140, %cst_81 {dimension_numbers = #tpu.dot_dimension_numbers<[1], [0], [0], [1], [0, 0, 1, 1], [], []>} : vector<32x288xbf16>, vector<288x256xbf16>, vector<32x256xf32> -> vector<32x256xf32>
    %c0_82 = arith.constant 0 : index
    %c0_83 = arith.constant 0 : index
    %142 = vector.load %arg5[%c0_82, %c0_83] : memref<32x1xf32, #tpu.memory_space<vmem>>, vector<32x1xf32>
    %143 = vector.broadcast %142 : vector<32x1xf32> to vector<32x256xf32>
    %144 = arith.addf %141, %143 : vector<32x256xf32>
    %cst_84 = arith.constant dense<0.000000e+00> : vector<32xf32>
    %145 = vector.multi_reduction <add>, %144, %cst_84 [1] : vector<32x256xf32> to vector<32xf32>
    %146 = vector.shape_cast %145 : vector<32xf32> to vector<32x1xf32>
    %cst_85 = arith.constant 3.906250e-03 : f32
    %147 = vector.broadcast %cst_85 : f32 to vector<32x1xf32>
    %148 = arith.mulf %146, %147 : vector<32x1xf32>
    %c0_86 = arith.constant 0 : index
    %c0_87 = arith.constant 0 : index
    %149 = vector.load %arg6[%c0_86, %c0_87] : memref<2x32xf32, #tpu.memory_space<vmem>>, vector<2x32xf32>
    %cst_88 = arith.constant dense<0.000000e+00> : vector<2x1xf32>
    %150 = tpu.matmul %149, %148, %cst_88 {dimension_numbers = #tpu.dot_dimension_numbers<[1], [0], [0], [1], [0, 0, 1, 1], [], []>} : vector<2x32xf32>, vector<32x1xf32>, vector<2x1xf32> -> vector<2x1xf32>
    %c0_89 = arith.constant 0 : index
    %c0_90 = arith.constant 0 : index
    %151 = vector.load %arg7[%c0_89, %c0_90] : memref<2x1xf32, #tpu.memory_space<vmem>>, vector<2x1xf32>
    %152 = arith.addf %150, %151 : vector<2x1xf32>
    %cst_91 = arith.constant 0.000000e+00 : f32
    %153 = vector.broadcast %cst_91 : f32 to vector<2x1xf32>
    %154 = arith.maximumf %152, %153 : vector<2x1xf32>
    %c0_92 = arith.constant 0 : index
    %c0_93 = arith.constant 0 : index
    %155 = vector.load %arg8[%c0_92, %c0_93] : memref<32x2xf32, #tpu.memory_space<vmem>>, vector<32x2xf32>
    %cst_94 = arith.constant dense<0.000000e+00> : vector<32x1xf32>
    %156 = tpu.matmul %155, %154, %cst_94 {dimension_numbers = #tpu.dot_dimension_numbers<[1], [0], [0], [1], [0, 0, 1, 1], [], []>} : vector<32x2xf32>, vector<2x1xf32>, vector<32x1xf32> -> vector<32x1xf32>
    %c0_95 = arith.constant 0 : index
    %c0_96 = arith.constant 0 : index
    %157 = vector.load %arg9[%c0_95, %c0_96] : memref<32x1xf32, #tpu.memory_space<vmem>>, vector<32x1xf32>
    %158 = arith.addf %156, %157 : vector<32x1xf32>
    %159 = arith.negf %158 : vector<32x1xf32>
    %160 = math.exp %159 : vector<32x1xf32>
    %cst_97 = arith.constant 1.000000e+00 : f32
    %161 = vector.broadcast %cst_97 : f32 to vector<32x1xf32>
    %162 = arith.addf %161, %160 : vector<32x1xf32>
    %163 = arith.divf %161, %162 : vector<32x1xf32>
    %164 = vector.broadcast %163 : vector<32x1xf32> to vector<32x256xf32>
    %165 = arith.mulf %144, %164 : vector<32x256xf32>
    %c0_98 = arith.constant 0 : index
    %c0_99 = arith.constant 0 : index
    %c0_100 = arith.constant 0 : index
    %166 = vector.load %arg1[%c0_98, %c0_99, %c0_100] : memref<1x32x256xf32, #tpu.memory_space<vmem>>, vector<1x32x256xf32>
    %167 = vector.shape_cast %166 : vector<1x32x256xf32> to vector<32x256xf32>
    %168 = arith.addf %165, %167 : vector<32x256xf32>
    %c0_101 = arith.constant 0 : index
    %c0_102 = arith.constant 0 : index
    %c0_103 = arith.constant 0 : index
    %169 = vector.load %arg10[%c0_101, %c0_102, %c0_103] : memref<1x32x256xf32, #tpu.memory_space<vmem>>, vector<1x32x256xf32>
    %170 = vector.shape_cast %169 : vector<1x32x256xf32> to vector<32x256xf32>
    %171 = vector.shape_cast %168 : vector<32x256xf32> to vector<1x32x256xf32>
    tpu.vector_store %arg10[%c0_101, %c0_102, %c0_103], %171 {strides = array<i32>} : memref<1x32x256xf32, #tpu.memory_space<vmem>>, vector<1x32x256xf32>,
    return
  }
  func.func @transform_0(%arg0: i32) -> (i32, i32, i32) {
    %c0_i32 = arith.constant 0 : i32
    %c0_i32_0 = arith.constant 0 : i32
    %c0_i32_1 = arith.constant 0 : i32
    return %arg0, %c0_i32, %c0_i32_0 : i32, i32, i32
  }
  func.func @transform_1(%arg0: i32) -> (i32, i32) {
    %c0_i32 = arith.constant 0 : i32
    %c0_i32_0 = arith.constant 0 : i32
    %c0_i32_1 = arith.constant 0 : i32
    return %c0_i32, %c0_i32_0 : i32, i32
  }
  func.func @transform_2(%arg0: i32) -> (i32, i32) {
    %c0_i32 = arith.constant 0 : i32
    %c0_i32_0 = arith.constant 0 : i32
    %c0_i32_1 = arith.constant 0 : i32
    return %c0_i32, %c0_i32_0 : i32, i32
  }
  func.func @transform_3(%arg0: i32) -> (i32, i32) {
    %c0_i32 = arith.constant 0 : i32
    %c0_i32_0 = arith.constant 0 : i32
    %c0_i32_1 = arith.constant 0 : i32
    return %c0_i32, %c0_i32_0 : i32, i32
  }
  func.func @transform_4(%arg0: i32) -> (i32, i32) {
    %c0_i32 = arith.constant 0 : i32
    %c0_i32_0 = arith.constant 0 : i32
    %c0_i32_1 = arith.constant 0 : i32
    return %c0_i32, %c0_i32_0 : i32, i32
  }
  func.func @transform_5(%arg0: i32) -> (i32, i32) {
    %c0_i32 = arith.constant 0 : i32
    %c0_i32_0 = arith.constant 0 : i32
    %c0_i32_1 = arith.constant 0 : i32
    return %c0_i32, %c0_i32_0 : i32, i32
  }
  func.func @transform_6(%arg0: i32) -> (i32, i32) {
    %c0_i32 = arith.constant 0 : i32
    %c0_i32_0 = arith.constant 0 : i32
    %c0_i32_1 = arith.constant 0 : i32
    return %c0_i32, %c0_i32_0 : i32, i32
  }
  func.func @transform_7(%arg0: i32) -> (i32, i32) {
    %c0_i32 = arith.constant 0 : i32
    %c0_i32_0 = arith.constant 0 : i32
    %c0_i32_1 = arith.constant 0 : i32
    return %c0_i32, %c0_i32_0 : i32, i32
  }
  func.func @transform_8(%arg0: i32) -> (i32, i32) {
    %c0_i32 = arith.constant 0 : i32
    %c0_i32_0 = arith.constant 0 : i32
    %c0_i32_1 = arith.constant 0 : i32
    return %c0_i32, %c0_i32_0 : i32, i32
  }
  func.func @transform_9(%arg0: i32) -> (i32, i32, i32) {
    %c0_i32 = arith.constant 0 : i32
    %c0_i32_0 = arith.constant 0 : i32
    %c0_i32_1 = arith.constant 0 : i32
    return %arg0, %c0_i32, %c0_i32_0 : i32, i32, i32
  }
}

</mosaic_0001>

<llo_original>
// kernel: tpu_custom_call.1
$region0: #{tpu_custom_call.1}
  #allocation0 [shape = 'u32[]', space=smem, size = 0x4, offset = 0x4, fixed_abs, tag = 'smem constant byte address 0x4 - core index']
  #allocation1 [shape = 'u32[144,128]{1,0:T(1,128)}', space=vmem, size = 0x12000, scoped, tag = 'internal scratch']
  #allocation2 [shape = 'bf16[288,256]{1,0:T(8,128)(2,1)}', space=vmem, size = 0x24000, scoped, tag = 'scratch operand']
  %s0 = inlined_call_operand.vmem [shape: f32[2,32,256], index: 0, kind: input, shape index: {}]
  %s1 = inlined_call_operand.hbm [shape: bf16[32,288], index: 1, kind: input, shape index: {}]
  %s2 = inlined_call_operand.vmem [shape: f32[32,1], index: 2, kind: input, shape index: {}]
  %s3 = inlined_call_operand.hbm [shape: bf16[32,288], index: 3, kind: input, shape index: {}]
  %s4 = inlined_call_operand.vmem [shape: f32[32,1], index: 4, kind: input, shape index: {}]
  %s5 = inlined_call_operand.vmem [shape: f32[2,32], index: 5, kind: input, shape index: {}]
  %s6 = inlined_call_operand.vmem [shape: f32[2,1], index: 6, kind: input, shape index: {}]
  %s7 = inlined_call_operand.vmem [shape: f32[32,2], index: 7, kind: input, shape index: {}]
  %s8 = inlined_call_operand.vmem [shape: f32[32,1], index: 8, kind: input, shape index: {}]
  %s9 = inlined_call_operand.hbm [shape: f32[2,32,256], index: 9, kind: output, shape index: {}]
  %s10 = sld [smem:[#allocation0]]
  $region77: #{tpu_custom_call.1} parent=0
    _
  %s12 = ssub.s32 1, %s10
  %s13 = scalar_select 0, %s12, %s10
  $region1: #{tpu_custom_call.1} parent=0
    #allocation3 [shape = 'u8[24576]{0}', space=vmem, size = 0x6000, scoped, tag = 'input window, operand 1, single buffered']
    #allocation4 [shape = 's32[2]{0}', space=sflag, size = 0x8, scoped, tag = 'scoped memory for tpu_custom_call.1']
    #allocation5 [shape = 's32[2]{0}', space=sflag, size = 0x8, scoped, tag = 'scoped memory for tpu_custom_call.1']
    #allocation6 [shape = 'u8[24576]{0}', space=vmem, size = 0x6000, scoped, tag = 'input window, operand 3, single buffered']
    #allocation7 [shape = 's32[1]{0}', space=sflag, size = 0x4, scoped, tag = 'scoped memory for tpu_custom_call.1']
    #allocation8 [shape = 'u8[65536]{0}', space=vmem, size = 0x10000, scoped, tag = 'output window, operand 0']
    %14 = vsyncpa [#allocation4], 0
    %15 = vsyncpa [#allocation7], 0
    %16 = vsyncpa [#allocation5], 0
    %s17 = scalar_lea.sflag [#allocation5], 1
    %18 = vsyncpa %s17, 0
    loop: start=0, step=1, limit=4
    $region2: #{tpu_custom_call.1} parent=1 // loop_pre_header
      _
    $region3: #{tpu_custom_call.1} parent=1 // loop_header
      %s20 = sphi 0, %s24
      %p21 = scmp.ge.s32.totalorder %s20, 4
      %s30 = sphi 0, %s32
      %s33 = sphi 0, %s30
      %s34 = sphi 0, %s33
      %s50 = sphi 0, %s34
      %s54 = sphi 0, %s54
      %s56 = sphi 0, %s54
      %s57 = sphi 0, %s56
      %s71 = sphi 0, %s57
      %s75 = sphi 0, %s75
      %s77 = sphi 0, %s75
      %s78 = sphi 0, %s77
      %s92 = sphi 0, %s78
      %s96 = sphi 0, %s96
      %s98 = sphi 0, %s96
      %s99 = sphi 0, %s98
      %s113 = sphi 0, %s99
      %s117 = sphi 0, %s117
      %s119 = sphi 0, %s117
      %s120 = sphi 0, %s119
      %s134 = sphi 0, %s120
      %s138 = sphi 0, %s138
      %s140 = sphi 0, %s138
      %s141 = sphi 0, %s140
      %s155 = sphi 0, %s141
      %s159 = sphi 0, %s159
      %s161 = sphi 0, %s159
      %s162 = sphi 0, %s161
      %s176 = sphi 0, %s162
      %s180 = sphi 0, %s180
      %s182 = sphi 0, %s180
      %s183 = sphi 0, %s182
      %s197 = sphi 0, %s183
      %s201 = sphi 0, %s201
      %s203 = sphi 0, %s201
      %s204 = sphi 0, %s203
      %s218 = sphi 0, %s204
      %s224 = sphi 0, %s226
      %s227 = sphi 0, %s224
      %s228 = sphi 0, %s227
      %s244 = sphi 0, %s228
    $region4: #{tpu_custom_call.1} parent=1 // loop_header_branch
      %23 = sbr.rel (%p21) target = $region8
    $region5: #{tpu_custom_call.1} parent=1 // loop_body
      %s25 = ssub.s32 %s20, 1
      %s26 = ssub.s32 %s20, 2
      %s27 = sadd.s32 %s20, 1
      %s28 = ssub.s32 %s20, %s27
      %p29 = scmp.eq.s32.totalorder %s28, 0
      %s31 = sadd.s32 %s30, 1
      %s32 = scalar_select %p29, %s30, %s31
      %p35 = pneg %p29
      %p36 = scmp.eq.s32.totalorder %s20, 1
      %p37 = por %p35, %p36
      %p38 = scmp.ne.s32.totalorder %s30, %s33
      %p39 = scmp.eq.s32.totalorder %s20, 0
      %p40 = por %p38, %p39
      %p41 = scmp.ne.s32.totalorder %s30, %s33
      %p42 = scmp.eq.s32.totalorder %s25, 1
      %p43 = por %p41, %p42
      %p44 = scmp.ne.s32.totalorder %s33, %s34
      %p45 = scmp.eq.s32.totalorder %s25, 0
      %p46 = por %p44, %p45
      %p47 = scmp.ne.s32.totalorder %s33, %s34
      %p48 = scmp.eq.s32.totalorder %s26, 1
      %p49 = por %p47, %p48
      %p51 = scmp.ne.s32.totalorder %s34, %s50
      %p52 = scmp.eq.s32.totalorder %s26, 0
      %p53 = por %p51, %p52
      %s55 = sadd.s32 %s54, 1
      %p58 = scmp.eq.s32.totalorder %s20, 1
      %p59 = scmp.ne.s32.totalorder %s54, %s56
      %p60 = scmp.eq.s32.totalorder %s20, 0
      %p61 = por %p59, %p60
      %p62 = scmp.ne.s32.totalorder %s54, %s56
      %p63 = scmp.eq.s32.totalorder %s25, 1
      %p64 = por %p62, %p63
      %p65 = scmp.ne.s32.totalorder %s56, %s57
      %p66 = scmp.eq.s32.totalorder %s25, 0
      %p67 = por %p65, %p66
      %p68 = scmp.ne.s32.totalorder %s56, %s57
      %p69 = scmp.eq.s32.totalorder %s26, 1
      %p70 = por %p68, %p69
      %p72 = scmp.ne.s32.totalorder %s57, %s71
      %p73 = scmp.eq.s32.totalorder %s26, 0
      %p74 = por %p72, %p73
      %s76 = sadd.s32 %s75, 1
      %p79 = scmp.eq.s32.totalorder %s20, 1
      %p80 = scmp.ne.s32.totalorder %s75, %s77
      %p81 = scmp.eq.s32.totalorder %s20, 0
      %p82 = por %p80, %p81
      %p83 = scmp.ne.s32.totalorder %s75, %s77
      %p84 = scmp.eq.s32.totalorder %s25, 1
      %p85 = por %p83, %p84
      %p86 = scmp.ne.s32.totalorder %s77, %s78
      %p87 = scmp.eq.s32.totalorder %s25, 0
      %p88 = por %p86, %p87
      %p89 = scmp.ne.s32.totalorder %s77, %s78
      %p90 = scmp.eq.s32.totalorder %s26, 1
      %p91 = por %p89, %p90
      %p93 = scmp.ne.s32.totalorder %s78, %s92
      %p94 = scmp.eq.s32.totalorder %s26, 0
      %p95 = por %p93, %p94
      %s97 = sadd.s32 %s96, 1
      %p100 = scmp.eq.s32.totalorder %s20, 1
      %p101 = scmp.ne.s32.totalorder %s96, %s98
      %p102 = scmp.eq.s32.totalorder %s20, 0
      %p103 = por %p101, %p102
      %p104 = scmp.ne.s32.totalorder %s96, %s98
      %p105 = scmp.eq.s32.totalorder %s25, 1
      %p106 = por %p104, %p105
      %p107 = scmp.ne.s32.totalorder %s98, %s99
      %p108 = scmp.eq.s32.totalorder %s25, 0
      %p109 = por %p107, %p108
      %p110 = scmp.ne.s32.totalorder %s98, %s99
      %p111 = scmp.eq.s32.totalorder %s26, 1
      %p112 = por %p110, %p111
      %p114 = scmp.ne.s32.totalorder %s99, %s113
      %p115 = scmp.eq.s32.totalorder %s26, 0
      %p116 = por %p114, %p115
      %s118 = sadd.s32 %s117, 1
      %p121 = scmp.eq.s32.totalorder %s20, 1
      %p122 = scmp.ne.s32.totalorder %s117, %s119
      %p123 = scmp.eq.s32.totalorder %s20, 0
      %p124 = por %p122, %p123
      %p125 = scmp.ne.s32.totalorder %s117, %s119
      %p126 = scmp.eq.s32.totalorder %s25, 1
      %p127 = por %p125, %p126
      %p128 = scmp.ne.s32.totalorder %s119, %s120
      %p129 = scmp.eq.s32.totalorder %s25, 0
      %p130 = por %p128, %p129
      %p131 = scmp.ne.s32.totalorder %s119, %s120
      %p132 = scmp.eq.s32.totalorder %s26, 1
      %p133 = por %p131, %p132
      %p135 = scmp.ne.s32.totalorder %s120, %s134
      %p136 = scmp.eq.s32.totalorder %s26, 0
      %p137 = por %p135, %p136
      %s139 = sadd.s32 %s138, 1
      %p142 = scmp.eq.s32.totalorder %s20, 1
      %p143 = scmp.ne.s32.totalorder %s138, %s140
      %p144 = scmp.eq.s32.totalorder %s20, 0
      %p145 = por %p143, %p144
      %p146 = scmp.ne.s32.totalorder %s138, %s140
      %p147 = scmp.eq.s32.totalorder %s25, 1
      %p148 = por %p146, %p147
      %p149 = scmp.ne.s32.totalorder %s140, %s141
      %p150 = scmp.eq.s32.totalorder %s25, 0
      %p151 = por %p149, %p150
      %p152 = scmp.ne.s32.totalorder %s140, %s141
      %p153 = scmp.eq.s32.totalorder %s26, 1
      %p154 = por %p152, %p153
      %p156 = scmp.ne.s32.totalorder %s141, %s155
      %p157 = scmp.eq.s32.totalorder %s26, 0
      %p158 = por %p156, %p157
      %s160 = sadd.s32 %s159, 1
      %p163 = scmp.eq.s32.totalorder %s20, 1
      %p164 = scmp.ne.s32.totalorder %s159, %s161
      %p165 = scmp.eq.s32.totalorder %s20, 0
      %p166 = por %p164, %p165
      %p167 = scmp.ne.s32.totalorder %s159, %s161
      %p168 = scmp.eq.s32.totalorder %s25, 1
      %p169 = por %p167, %p168
      %p170 = scmp.ne.s32.totalorder %s161, %s162
      %p171 = scmp.eq.s32.totalorder %s25, 0
      %p172 = por %p170, %p171
      %p173 = scmp.ne.s32.totalorder %s161, %s162
      %p174 = scmp.eq.s32.totalorder %s26, 1
      %p175 = por %p173, %p174
      %p177 = scmp.ne.s32.totalorder %s162, %s176
      %p178 = scmp.eq.s32.totalorder %s26, 0
      %p179 = por %p177, %p178
      %s181 = sadd.s32 %s180, 1
      %p184 = scmp.eq.s32.totalorder %s20, 1
      %p185 = scmp.ne.s32.totalorder %s180, %s182
      %p186 = scmp.eq.s32.totalorder %s20, 0
      %p187 = por %p185, %p186
      %p188 = scmp.ne.s32.totalorder %s180, %s182
      %p189 = scmp.eq.s32.totalorder %s25, 1
      %p190 = por %p188, %p189
      %p191 = scmp.ne.s32.totalorder %s182, %s183
      %p192 = scmp.eq.s32.totalorder %s25, 0
      %p193 = por %p191, %p192
      %p194 = scmp.ne.s32.totalorder %s182, %s183
      %p195 = scmp.eq.s32.totalorder %s26, 1
      %p196 = por %p194, %p195
      %p198 = scmp.ne.s32.totalorder %s183, %s197
      %p199 = scmp.eq.s32.totalorder %s26, 0
      %p200 = por %p198, %p199
      %s202 = sadd.s32 %s201, 1
      %p205 = scmp.eq.s32.totalorder %s20, 1
      %p206 = scmp.ne.s32.totalorder %s201, %s203
      %p207 = scmp.eq.s32.totalorder %s20, 0
      %p208 = por %p206, %p207
      %p209 = scmp.ne.s32.totalorder %s201, %s203
      %p210 = scmp.eq.s32.totalorder %s25, 1
      %p211 = por %p209, %p210
      %p212 = scmp.ne.s32.totalorder %s203, %s204
      %p213 = scmp.eq.s32.totalorder %s25, 0
      %p214 = por %p212, %p213
      %p215 = scmp.ne.s32.totalorder %s203, %s204
      %p216 = scmp.eq.s32.totalorder %s26, 1
      %p217 = por %p215, %p216
      %p219 = scmp.ne.s32.totalorder %s204, %s218
      %p220 = scmp.eq.s32.totalorder %s26, 0
      %p221 = por %p219, %p220
      %s222 = ssub.s32 %s20, %s27
      %p223 = scmp.eq.s32.totalorder %s222, 0
      %s225 = sadd.s32 %s224, 1
      %s226 = scalar_select %p223, %s224, %s225
      %p229 = pneg %p223
      %p230 = scmp.eq.s32.totalorder %s20, 1
      %p231 = por %p229, %p230
      %p232 = scmp.ne.s32.totalorder %s224, %s227
      %p233 = scmp.eq.s32.totalorder %s20, 0
      %p234 = por %p232, %p233
      %p235 = scmp.ne.s32.totalorder %s224, %s227
      %p236 = scmp.eq.s32.totalorder %s25, 1
      %p237 = por %p235, %p236
      %p238 = scmp.ne.s32.totalorder %s227, %s228
      %p239 = scmp.eq.s32.totalorder %s25, 0
      %p240 = por %p238, %p239
      %p241 = scmp.ne.s32.totalorder %s227, %s228
      %p242 = scmp.eq.s32.totalorder %s26, 1
      %p243 = por %p241, %p242
      %p245 = scmp.ne.s32.totalorder %s228, %s244
      %p246 = scmp.eq.s32.totalorder %s26, 0
      %p247 = por %p245, %p246
      %p248 = scmp.le.s32.totalorder 1, %s20
      %p249 = scmp.lt.s32.totalorder %s20, 3
      %p250 = pnand %p248, %p249
      %p251 = pneg %p250
      // Predicated region
      $region9: #{tpu_custom_call.1} parent=5 // pred_check
        _
      $region10: #{tpu_custom_call.1} parent=5 // pred_check_branch
        %253 = sbr.rel (%p250) target = $region12
      $region11: #{tpu_custom_call.1} parent=5 // pred_region
        %s254 = ssub.s32 %s20, 1
        // Predicated region
        $region13: #{tpu_custom_call.1} parent=11 // pred_check
          %p255 = pneg %p67
        $region14: #{tpu_custom_call.1} parent=11 // pred_check_branch
          %257 = sbr.rel (%p255) target = $region16
        $region15: #{tpu_custom_call.1} parent=11 // pred_region
          %s259 = ssub.s32 768, 768
          %260 = vsyncadd [#allocation4], %s259
          %s261 = sshll.u32 [#allocation3], 4
          %s262 = int_to_ptr.vmem [resolvable:$true] %s261
          %267 = dma.hbm_to_vmem [thread:$0]  %s1, 768, %s262, [#allocation4], 192, 192, 12
        $region16: #{tpu_custom_call.1} parent=11 // pred_fallthru
          _
        // Predicated region
        $region17: #{tpu_custom_call.1} parent=11 // pred_check
          %p268 = pneg %p88
        $region18: #{tpu_custom_call.1} parent=11 // pred_check_branch
          %270 = sbr.rel (%p268) target = $region20
        $region19: #{tpu_custom_call.1} parent=11 // pred_region
          _
        $region20: #{tpu_custom_call.1} parent=11 // pred_fallthru
          _
        // Predicated region
        $region21: #{tpu_custom_call.1} parent=11 // pred_check
          %p271 = pneg %p109
        $region22: #{tpu_custom_call.1} parent=11 // pred_check_branch
          %273 = sbr.rel (%p271) target = $region24
        $region23: #{tpu_custom_call.1} parent=11 // pred_region
          %s275 = ssub.s32 768, 768
          %276 = vsyncadd [#allocation7], %s275
          %s277 = sshll.u32 [#allocation6], 4
          %s278 = int_to_ptr.vmem [resolvable:$true] %s277
          %283 = dma.hbm_to_vmem [thread:$0]  %s3, 768, %s278, [#allocation7], 192, 192, 12
        $region24: #{tpu_custom_call.1} parent=11 // pred_fallthru
          _
        // Predicated region
        $region25: #{tpu_custom_call.1} parent=11 // pred_check
          %p284 = pneg %p130
        $region26: #{tpu_custom_call.1} parent=11 // pred_check_branch
          %286 = sbr.rel (%p284) target = $region28
        $region27: #{tpu_custom_call.1} parent=11 // pred_region
          _
        $region28: #{tpu_custom_call.1} parent=11 // pred_fallthru
          _
        // Predicated region
        $region29: #{tpu_custom_call.1} parent=11 // pred_check
          %p287 = pneg %p151
        $region30: #{tpu_custom_call.1} parent=11 // pred_check_branch
          %289 = sbr.rel (%p287) target = $region32
        $region31: #{tpu_custom_call.1} parent=11 // pred_region
          _
        $region32: #{tpu_custom_call.1} parent=11 // pred_fallthru
          _
        // Predicated region
        $region33: #{tpu_custom_call.1} parent=11 // pred_check
          %p290 = pneg %p172
        $region34: #{tpu_custom_call.1} parent=11 // pred_check_branch
          %292 = sbr.rel (%p290) target = $region36
        $region35: #{tpu_custom_call.1} parent=11 // pred_region
          _
        $region36: #{tpu_custom_call.1} parent=11 // pred_fallthru
          _
        // Predicated region
        $region37: #{tpu_custom_call.1} parent=11 // pred_check
          %p293 = pneg %p193
        $region38: #{tpu_custom_call.1} parent=11 // pred_check_branch
          %295 = sbr.rel (%p293) target = $region40
        $region39: #{tpu_custom_call.1} parent=11 // pred_region
          _
        $region40: #{tpu_custom_call.1} parent=11 // pred_fallthru
          _
        // Predicated region
        $region41: #{tpu_custom_call.1} parent=11 // pred_check
          %p296 = pneg %p214
        $region42: #{tpu_custom_call.1} parent=11 // pred_check_branch
          %298 = sbr.rel (%p296) target = $region44
        $region43: #{tpu_custom_call.1} parent=11 // pred_region
          _
        $region44: #{tpu_custom_call.1} parent=11 // pred_fallthru
          _
      $region12: #{tpu_custom_call.1} parent=5 // pred_fallthru
        _
      %p299 = scmp.lt.s32.totalorder %s20, 2
      // Predicated region
      $region45: #{tpu_custom_call.1} parent=5 // pred_check
        %p300 = pneg %p299
      $region46: #{tpu_custom_call.1} parent=5 // pred_check_branch
        %302 = sbr.rel (%p300) target = $region48
      $region47: #{tpu_custom_call.1} parent=5 // pred_region
        // Predicated region
        $region49: #{tpu_custom_call.1} parent=47 // pred_check
          %p303 = pneg %p40
        $region50: #{tpu_custom_call.1} parent=47 // pred_check_branch
          %305 = sbr.rel (%p303) target = $region52
        $region51: #{tpu_custom_call.1} parent=47 // pred_region
          %p306 = scmp.lt.s32.totalorder %s20, 1
          %s307 = scalar_select %p306, %s20, 1
          %s308 = smul.addr %s307, 8
          %s309 = smul.addr %s308, 8
          %s310 = scalar_lea.vmem %s0, %s309
        $region52: #{tpu_custom_call.1} parent=47 // pred_fallthru
          _
      $region48: #{tpu_custom_call.1} parent=5 // pred_fallthru
        _
      %p311 = scmp.le.s32.totalorder 1, %s20
      %p312 = scmp.lt.s32.totalorder %s20, 3
      %p313 = pnand %p311, %p312
      %p314 = pneg %p313
      // Predicated region
      $region53: #{tpu_custom_call.1} parent=5 // pred_check
        _
      $region54: #{tpu_custom_call.1} parent=5 // pred_check_branch
        %316 = sbr.rel (%p313) target = $region56
      $region55: #{tpu_custom_call.1} parent=5 // pred_region
        %s317 = ssub.s32 %s20, 1
        // Predicated region
        $region57: #{tpu_custom_call.1} parent=55 // pred_check
          %p318 = pneg %p67
        $region58: #{tpu_custom_call.1} parent=55 // pred_check_branch
          %320 = sbr.rel (%p318) target = $region60
        $region59: #{tpu_custom_call.1} parent=55 // pred_region
          %321 = dma.done [#allocation4], 768
        $region60: #{tpu_custom_call.1} parent=55 // pred_fallthru
          _
        // Predicated region
        $region61: #{tpu_custom_call.1} parent=55 // pred_check
          %p322 = pneg %p109
        $region62: #{tpu_custom_call.1} parent=55 // pred_check_branch
          %324 = sbr.rel (%p322) target = $region64
        $region63: #{tpu_custom_call.1} parent=55 // pred_region
          %325 = dma.done [#allocation7], 768
        $region64: #{tpu_custom_call.1} parent=55 // pred_fallthru
          _
        %p326 = scmp.lt.s32.totalorder %s25, 1
        %s327 = scalar_select %p326, %s25, 1
        %s328 = smul.addr %s327, 8
        %s329 = smul.addr %s328, 8
        %s330 = scalar_lea.vmem %s0, %s329
        %p331 = pneg %p46
        %p332 = pneg %p43
        %p333 = pneg %p67
        %p334 = pneg %p64
        %p335 = pneg %p88
        %p336 = pneg %p85
        %p337 = pneg %p109
        %p338 = pneg %p106
        %p339 = pneg %p130
        %p340 = pneg %p127
        %p341 = pneg %p151
        %p342 = pneg %p148
        %p343 = pneg %p172
        %p344 = pneg %p169
        %p345 = pneg %p193
        %p346 = pneg %p190
        %p347 = pneg %p214
        %p348 = pneg %p211
        %p349 = pneg %p240
        %p350 = pneg %p237
        %s351 = sand.u32 %s227, 1
        %s352 = scalar_lea.sflag [#allocation5], %s351
        %s353 = sand.u32 %s227, 1
        %s354 = smul.addr %s353, 64
        %s355 = scalar_lea.vmem [#allocation8], %s354
        %p356 = scmp.lt.s32.totalorder %s25, 1
        %s357 = scalar_select %p356, %s25, 1
        %s358 = smul.addr %s357, 8
        %s359 = smul.addr %s358, 8
        %s360 = scalar_lea.vmem %s0, %s359
        %v362 = vlaneseq
        %v363 = vand.u32 %v362, 127
        %v364 = vadd.s32 %v363, 128
        %vm365 = vcmp.lt.s32.totalorder %v363, 0
        %v366 = vsub.s32 0, %v363
        %v367 = vsel %vm365, %v366, %v363
        %v368 = vshrl.u32 %v367, 4
        %v369 = vand.u32 %v367, 15
        %v370 = vsub.s32 0, %v369
        %v371 = vsel %vm365, %v370, %v369
        %vm372 = vcmp.lt.s32.totalorder %v364, 0
        %v373 = vsub.s32 0, %v364
        %v374 = vsel %vm372, %v373, %v364
        %v375 = vshrl.u32 %v374, 4
        %v376 = vand.u32 %v374, 15
        %v377 = vsub.s32 0, %v376
        %v378 = vsel %vm372, %v377, %v376
        %vm379 = vcmp.ne.s32.totalorder %v371, 0
        %vm380 = vcmp.ne.s32.totalorder %v378, 0
        %vm381 = vcmp.lt.s32.totalorder %v371, 0
        %vm382 = vcmp.lt.s32.totalorder %v378, 0
        %vm383 = vmand %vm381, %vm379
        %vm384 = vmand %vm382, %vm380
        %v385 = vadd.s32 %v371, 16
        %v386 = vadd.s32 %v378, 16
        %v387 = vsel %vm383, %v385, %v371
        %v388 = vsel %vm384, %v386, %v378
        %vm389 = vcmp.ge.s32.totalorder %v387, 1
        %vm390 = vcmp.ge.s32.totalorder %v388, 1
        %vm391 = vcmp.ge.s32.totalorder %v363, 16
        %vm392 = vcmp.ge.s32.totalorder %v364, 16
        %vm393 = vmand %vm389, %vm391
        %vm394 = vmand %vm390, %vm392
        %vm395 = vcmp.le.s32.totalorder %v387, 14
        %vm396 = vcmp.le.s32.totalorder %v388, 14
        %vm397 = vmand %vm395, %vm391
        %vm398 = vmand %vm396, %vm392
        %vm399 = vcmp.lt.s32.totalorder %v363, 240
        %vm400 = vcmp.lt.s32.totalorder %v364, 240
        %vm401 = vmand %vm389, %vm399
        %vm402 = vmand %vm390, %vm400
        %vm403 = vmand %vm395, %vm399
        %vm404 = vmand %vm396, %vm400
        %v405 = vld [vmem:[%s360] sm:$0xff]
        %v406 = vld [vmem:[%s360 + $0x8] sm:$0xff]
        %v407 = vld [vmem:[%s360 + $0x10] sm:$0xff]
        %v408 = vld [vmem:[%s360 + $0x18] sm:$0xff]
        %v409 = vld [vmem:[%s360 + $0x20] sm:$0xff]
        %v410 = vld [vmem:[%s360 + $0x28] sm:$0xff]
        %v411 = vld [vmem:[%s360 + $0x30] sm:$0xff]
        %v412 = vld [vmem:[%s360 + $0x38] sm:$0xff]
        %413 = vrot.lane.b32.xlu0 %v405, 17
        %v414 = vpop.permute.xlu0 %413
        %415 = vrot.lane.b32.xlu0 %v407, 17
        %v416 = vpop.permute.xlu0 %415
        %417 = vrot.lane.b32.xlu0 %v409, 17
        %v418 = vpop.permute.xlu0 %417
        %419 = vrot.lane.b32.xlu0 %v411, 17
        %v420 = vpop.permute.xlu0 %419
        %421 = vrot.lane.b32.xlu0 %v406, 17
        %v422 = vpop.permute.xlu0 %421
        %423 = vrot.lane.b32.xlu0 %v408, 17
        %v424 = vpop.permute.xlu0 %423
        %425 = vrot.lane.b32.xlu0 %v410, 17
        %v426 = vpop.permute.xlu0 %425
        %427 = vrot.lane.b32.xlu0 %v412, 17
        %v428 = vpop.permute.xlu0 %427
        %vm429 = vcmp.lt.s32.totalorder %v363, 17
        %v430 = vsel %vm429, %v414, %v422
        %v431 = vsel %vm429, %v416, %v424
        %v432 = vsel %vm429, %v418, %v426
        %v433 = vsel %vm429, %v420, %v428
        %v434 = vsel %vm429, %v422, %v414
        %v435 = vsel %vm429, %v424, %v416
        %v436 = vsel %vm429, %v426, %v418
        %v437 = vsel %vm429, %v428, %v420
        %v438 = vsel %vm393, %v434, 0.0
        %v439 = vsel %vm394, %v430, 0.0
        %v440 = vsel %vm393, %v435, 0.0
        %v441 = vsel %vm394, %v431, 0.0
        %v442 = vsel %vm393, %v436, 0.0
        %v443 = vsel %vm394, %v432, 0.0
        %v444 = vsel %vm393, %v437, 0.0
        %v445 = vsel %vm394, %v433, 0.0
        %v446 = vpack.c.bf16 %v440, %v438
        %v447 = vpack.c.bf16 %v441, %v439
        %v448 = vpack.c.bf16 %v444, %v442
        %v449 = vpack.c.bf16 %v445, %v443
        %v454 = vunpack.c.l.b16 %v446
        %v455 = vunpack.c.l.b16 %v447
        %v456 = vunpack.c.h.b16 %v446
        %v457 = vunpack.c.h.b16 %v447
        %v458 = vunpack.c.l.b16 %v448
        %v459 = vunpack.c.l.b16 %v449
        %v460 = vunpack.c.h.b16 %v448
        %v461 = vunpack.c.h.b16 %v449
        %v462 = vpack.c.b16 %v455, %v454
        %v463 = vpack.c.b16 %v457, %v456
        %v464 = vpack.c.b16 %v459, %v458
        %v465 = vpack.c.b16 %v461, %v460
        %470 = vst [vmem:[#allocation2] sm:$0xff] %v462
        %471 = vst [vmem:[#allocation2 + $0x8] sm:$0xff] %v463
        %472 = vst [vmem:[#allocation2 + $0x10] sm:$0xff] %v464
        %473 = vst [vmem:[#allocation2 + $0x18] sm:$0xff] %v465
        %474 = vrot.lane.b32.xlu0 %v405, 16
        %v475 = vpop.permute.xlu0 %474
        %476 = vrot.lane.b32.xlu0 %v407, 16
        %v477 = vpop.permute.xlu0 %476
        %478 = vrot.lane.b32.xlu0 %v409, 16
        %v479 = vpop.permute.xlu0 %478
        %480 = vrot.lane.b32.xlu0 %v411, 16
        %v481 = vpop.permute.xlu0 %480
        %482 = vrot.lane.b32.xlu0 %v406, 16
        %v483 = vpop.permute.xlu0 %482
        %484 = vrot.lane.b32.xlu0 %v408, 16
        %v485 = vpop.permute.xlu0 %484
        %486 = vrot.lane.b32.xlu0 %v410, 16
        %v487 = vpop.permute.xlu0 %486
        %488 = vrot.lane.b32.xlu0 %v412, 16
        %v489 = vpop.permute.xlu0 %488
        %vm490 = vcmp.lt.s32.totalorder %v363, 16
        %v491 = vsel %vm490, %v475, %v483
        %v492 = vsel %vm490, %v477, %v485
        %v493 = vsel %vm490, %v479, %v487
        %v494 = vsel %vm490, %v481, %v489
        %v495 = vsel %vm490, %v483, %v475
        %v496 = vsel %vm490, %v485, %v477
        %v497 = vsel %vm490, %v487, %v479
        %v498 = vsel %vm490, %v489, %v481
        %v499 = vsel %vm391, %v495, 0.0
        %v500 = vsel %vm392, %v491, 0.0
        %v501 = vsel %vm391, %v496, 0.0
        %v502 = vsel %vm392, %v492, 0.0
        %v503 = vsel %vm391, %v497, 0.0
        %v504 = vsel %vm392, %v493, 0.0
        %v505 = vsel %vm391, %v498, 0.0
        %v506 = vsel %vm392, %v494, 0.0
        %v507 = vpack.c.bf16 %v501, %v499
        %v508 = vpack.c.bf16 %v502, %v500
        %v509 = vpack.c.bf16 %v505, %v503
        %v510 = vpack.c.bf16 %v506, %v504
        %v515 = vunpack.c.l.b16 %v507
        %v516 = vunpack.c.l.b16 %v508
        %v517 = vunpack.c.h.b16 %v507
        %v518 = vunpack.c.h.b16 %v508
        %v519 = vunpack.c.l.b16 %v509
        %v520 = vunpack.c.l.b16 %v510
        %v521 = vunpack.c.h.b16 %v509
        %v522 = vunpack.c.h.b16 %v510
        %v523 = vpack.c.b16 %v516, %v515
        %v524 = vpack.c.b16 %v518, %v517
        %v525 = vpack.c.b16 %v520, %v519
        %v526 = vpack.c.b16 %v522, %v521
        %531 = vst [vmem:[#allocation2 + $0x20] sm:$0xff] %v523
        %532 = vst [vmem:[#allocation2 + $0x28] sm:$0xff] %v524
        %533 = vst [vmem:[#allocation2 + $0x30] sm:$0xff] %v525
        %534 = vst [vmem:[#allocation2 + $0x38] sm:$0xff] %v526
        %535 = vrot.lane.b32.xlu0 %v405, 15
        %v536 = vpop.permute.xlu0 %535
        %537 = vrot.lane.b32.xlu0 %v407, 15
        %v538 = vpop.permute.xlu0 %537
        %539 = vrot.lane.b32.xlu0 %v409, 15
        %v540 = vpop.permute.xlu0 %539
        %541 = vrot.lane.b32.xlu0 %v411, 15
        %v542 = vpop.permute.xlu0 %541
        %543 = vrot.lane.b32.xlu0 %v406, 15
        %v544 = vpop.permute.xlu0 %543
        %545 = vrot.lane.b32.xlu0 %v408, 15
        %v546 = vpop.permute.xlu0 %545
        %547 = vrot.lane.b32.xlu0 %v410, 15
        %v548 = vpop.permute.xlu0 %547
        %549 = vrot.lane.b32.xlu0 %v412, 15
        %v550 = vpop.permute.xlu0 %549
        %vm551 = vcmp.lt.s32.totalorder %v363, 15
        %v552 = vsel %vm551, %v536, %v544
        %v553 = vsel %vm551, %v538, %v546
        %v554 = vsel %vm551, %v540, %v548
        %v555 = vsel %vm551, %v542, %v550
        %v556 = vsel %vm551, %v544, %v536
        %v557 = vsel %vm551, %v546, %v538
        %v558 = vsel %vm551, %v548, %v540
        %v559 = vsel %vm551, %v550, %v542
        %v560 = vsel %vm397, %v556, 0.0
        %v561 = vsel %vm398, %v552, 0.0
        %v562 = vsel %vm397, %v557, 0.0
        %v563 = vsel %vm398, %v553, 0.0
        %v564 = vsel %vm397, %v558, 0.0
        %v565 = vsel %vm398, %v554, 0.0
        %v566 = vsel %vm397, %v559, 0.0
        %v567 = vsel %vm398, %v555, 0.0
        %v568 = vpack.c.bf16 %v562, %v560
        %v569 = vpack.c.bf16 %v563, %v561
        %v570 = vpack.c.bf16 %v566, %v564
        %v571 = vpack.c.bf16 %v567, %v565
        %v576 = vunpack.c.l.b16 %v568
        %v577 = vunpack.c.l.b16 %v569
        %v578 = vunpack.c.h.b16 %v568
        %v579 = vunpack.c.h.b16 %v569
        %v580 = vunpack.c.l.b16 %v570
        %v581 = vunpack.c.l.b16 %v571
        %v582 = vunpack.c.h.b16 %v570
        %v583 = vunpack.c.h.b16 %v571
        %v584 = vpack.c.b16 %v577, %v576
        %v585 = vpack.c.b16 %v579, %v578
        %v586 = vpack.c.b16 %v581, %v580
        %v587 = vpack.c.b16 %v583, %v582
        %592 = vst [vmem:[#allocation2 + $0x40] sm:$0xff] %v584
        %593 = vst [vmem:[#allocation2 + $0x48] sm:$0xff] %v585
        %594 = vst [vmem:[#allocation2 + $0x50] sm:$0xff] %v586
        %595 = vst [vmem:[#allocation2 + $0x58] sm:$0xff] %v587
        %596 = vrot.lane.b32.xlu0 %v405, 1
        %v597 = vpop.permute.xlu0 %596
        %598 = vrot.lane.b32.xlu0 %v407, 1
        %v599 = vpop.permute.xlu0 %598
        %600 = vrot.lane.b32.xlu0 %v409, 1
        %v601 = vpop.permute.xlu0 %600
        %602 = vrot.lane.b32.xlu0 %v411, 1
        %v603 = vpop.permute.xlu0 %602
        %604 = vrot.lane.b32.xlu0 %v406, 1
        %v605 = vpop.permute.xlu0 %604
        %606 = vrot.lane.b32.xlu0 %v408, 1
        %v607 = vpop.permute.xlu0 %606
        %608 = vrot.lane.b32.xlu0 %v410, 1
        %v609 = vpop.permute.xlu0 %608
        %610 = vrot.lane.b32.xlu0 %v412, 1
        %v611 = vpop.permute.xlu0 %610
        %vm612 = vcmp.lt.s32.totalorder %v363, 1
        %v613 = vsel %vm612, %v597, %v605
        %v614 = vsel %vm612, %v599, %v607
        %v615 = vsel %vm612, %v601, %v609
        %v616 = vsel %vm612, %v603, %v611
        %v617 = vsel %vm612, %v605, %v597
        %v618 = vsel %vm612, %v607, %v599
        %v619 = vsel %vm612, %v609, %v601
        %v620 = vsel %vm612, %v611, %v603
        %v621 = vsel %vm389, %v617, 0.0
        %v622 = vsel %vm390, %v613, 0.0
        %v623 = vsel %vm389, %v618, 0.0
        %v624 = vsel %vm390, %v614, 0.0
        %v625 = vsel %vm389, %v619, 0.0
        %v626 = vsel %vm390, %v615, 0.0
        %v627 = vsel %vm389, %v620, 0.0
        %v628 = vsel %vm390, %v616, 0.0
        %v629 = vpack.c.bf16 %v623, %v621
        %v630 = vpack.c.bf16 %v624, %v622
        %v631 = vpack.c.bf16 %v627, %v625
        %v632 = vpack.c.bf16 %v628, %v626
        %v637 = vunpack.c.l.b16 %v629
        %v638 = vunpack.c.l.b16 %v630
        %v639 = vunpack.c.h.b16 %v629
        %v640 = vunpack.c.h.b16 %v630
        %v641 = vunpack.c.l.b16 %v631
        %v642 = vunpack.c.l.b16 %v632
        %v643 = vunpack.c.h.b16 %v631
        %v644 = vunpack.c.h.b16 %v632
        %v645 = vpack.c.b16 %v638, %v637
        %v646 = vpack.c.b16 %v640, %v639
        %v647 = vpack.c.b16 %v642, %v641
        %v648 = vpack.c.b16 %v644, %v643
        %653 = vst [vmem:[#allocation2 + $0x60] sm:$0xff] %v645
        %654 = vst [vmem:[#allocation2 + $0x68] sm:$0xff] %v646
        %655 = vst [vmem:[#allocation2 + $0x70] sm:$0xff] %v647
        %656 = vst [vmem:[#allocation2 + $0x78] sm:$0xff] %v648
        %v657 = vpack.c.bf16 %v407, %v405
        %v658 = vpack.c.bf16 %v408, %v406
        %v659 = vpack.c.bf16 %v411, %v409
        %v660 = vpack.c.bf16 %v412, %v410
        %v665 = vunpack.c.l.b16 %v657
        %v666 = vunpack.c.l.b16 %v658
        %v667 = vunpack.c.h.b16 %v657
        %v668 = vunpack.c.h.b16 %v658
        %v669 = vunpack.c.l.b16 %v659
        %v670 = vunpack.c.l.b16 %v660
        %v671 = vunpack.c.h.b16 %v659
        %v672 = vunpack.c.h.b16 %v660
        %v673 = vpack.c.b16 %v666, %v665
        %v674 = vpack.c.b16 %v668, %v667
        %v675 = vpack.c.b16 %v670, %v669
        %v676 = vpack.c.b16 %v672, %v671
        %681 = vst [vmem:[#allocation2 + $0x80] sm:$0xff] %v673
        %682 = vst [vmem:[#allocation2 + $0x88] sm:$0xff] %v674
        %683 = vst [vmem:[#allocation2 + $0x90] sm:$0xff] %v675
        %684 = vst [vmem:[#allocation2 + $0x98] sm:$0xff] %v676
        %685 = vrot.lane.b32.xlu0 %v405, 127
        %v686 = vpop.permute.xlu0 %685
        %687 = vrot.lane.b32.xlu0 %v407, 127
        %v688 = vpop.permute.xlu0 %687
        %689 = vrot.lane.b32.xlu0 %v409, 127
        %v690 = vpop.permute.xlu0 %689
        %691 = vrot.lane.b32.xlu0 %v411, 127
        %v692 = vpop.permute.xlu0 %691
        %693 = vrot.lane.b32.xlu0 %v406, 127
        %v694 = vpop.permute.xlu0 %693
        %695 = vrot.lane.b32.xlu0 %v408, 127
        %v696 = vpop.permute.xlu0 %695
        %697 = vrot.lane.b32.xlu0 %v410, 127
        %v698 = vpop.permute.xlu0 %697
        %699 = vrot.lane.b32.xlu0 %v412, 127
        %v700 = vpop.permute.xlu0 %699
        %vm701 = vcmp.lt.s32.totalorder %v363, 127
        %v702 = vsel %vm701, %v686, %v694
        %v703 = vsel %vm701, %v688, %v696
        %v704 = vsel %vm701, %v690, %v698
        %v705 = vsel %vm701, %v692, %v700
        %v706 = vsel %vm701, %v694, %v686
        %v707 = vsel %vm701, %v696, %v688
        %v708 = vsel %vm701, %v698, %v690
        %v709 = vsel %vm701, %v700, %v692
        %v710 = vsel %vm395, %v702, 0.0
        %v711 = vsel %vm396, %v706, 0.0
        %v712 = vsel %vm395, %v703, 0.0
        %v713 = vsel %vm396, %v707, 0.0
        %v714 = vsel %vm395, %v704, 0.0
        %v715 = vsel %vm396, %v708, 0.0
        %v716 = vsel %vm395, %v705, 0.0
        %v717 = vsel %vm396, %v709, 0.0
        %v718 = vpack.c.bf16 %v712, %v710
        %v719 = vpack.c.bf16 %v713, %v711
        %v720 = vpack.c.bf16 %v716, %v714
        %v721 = vpack.c.bf16 %v717, %v715
        %v726 = vunpack.c.l.b16 %v718
        %v727 = vunpack.c.l.b16 %v719
        %v728 = vunpack.c.h.b16 %v718
        %v729 = vunpack.c.h.b16 %v719
        %v730 = vunpack.c.l.b16 %v720
        %v731 = vunpack.c.l.b16 %v721
        %v732 = vunpack.c.h.b16 %v720
        %v733 = vunpack.c.h.b16 %v721
        %v734 = vpack.c.b16 %v727, %v726
        %v735 = vpack.c.b16 %v729, %v728
        %v736 = vpack.c.b16 %v731, %v730
        %v737 = vpack.c.b16 %v733, %v732
        %742 = vst [vmem:[#allocation2 + $0xa0] sm:$0xff] %v734
        %743 = vst [vmem:[#allocation2 + $0xa8] sm:$0xff] %v735
        %744 = vst [vmem:[#allocation2 + $0xb0] sm:$0xff] %v736
        %745 = vst [vmem:[#allocation2 + $0xb8] sm:$0xff] %v737
        %746 = vrot.lane.b32.xlu0 %v405, 113
        %v747 = vpop.permute.xlu0 %746
        %748 = vrot.lane.b32.xlu0 %v407, 113
        %v749 = vpop.permute.xlu0 %748
        %750 = vrot.lane.b32.xlu0 %v409, 113
        %v751 = vpop.permute.xlu0 %750
        %752 = vrot.lane.b32.xlu0 %v411, 113
        %v753 = vpop.permute.xlu0 %752
        %754 = vrot.lane.b32.xlu0 %v406, 113
        %v755 = vpop.permute.xlu0 %754
        %756 = vrot.lane.b32.xlu0 %v408, 113
        %v757 = vpop.permute.xlu0 %756
        %758 = vrot.lane.b32.xlu0 %v410, 113
        %v759 = vpop.permute.xlu0 %758
        %760 = vrot.lane.b32.xlu0 %v412, 113
        %v761 = vpop.permute.xlu0 %760
        %vm762 = vcmp.lt.s32.totalorder %v363, 113
        %v763 = vsel %vm762, %v747, %v755
        %v764 = vsel %vm762, %v749, %v757
        %v765 = vsel %vm762, %v751, %v759
        %v766 = vsel %vm762, %v753, %v761
        %v767 = vsel %vm762, %v755, %v747
        %v768 = vsel %vm762, %v757, %v749
        %v769 = vsel %vm762, %v759, %v751
        %v770 = vsel %vm762, %v761, %v753
        %v771 = vsel %vm401, %v763, 0.0
        %v772 = vsel %vm402, %v767, 0.0
        %v773 = vsel %vm401, %v764, 0.0
        %v774 = vsel %vm402, %v768, 0.0
        %v775 = vsel %vm401, %v765, 0.0
        %v776 = vsel %vm402, %v769, 0.0
        %v777 = vsel %vm401, %v766, 0.0
        %v778 = vsel %vm402, %v770, 0.0
        %v779 = vpack.c.bf16 %v773, %v771
        %v780 = vpack.c.bf16 %v774, %v772
        %v781 = vpack.c.bf16 %v777, %v775
        %v782 = vpack.c.bf16 %v778, %v776
        %v787 = vunpack.c.l.b16 %v779
        %v788 = vunpack.c.l.b16 %v780
        %v789 = vunpack.c.h.b16 %v779
        %v790 = vunpack.c.h.b16 %v780
        %v791 = vunpack.c.l.b16 %v781
        %v792 = vunpack.c.l.b16 %v782
        %v793 = vunpack.c.h.b16 %v781
        %v794 = vunpack.c.h.b16 %v782
        %v795 = vpack.c.b16 %v788, %v787
        %v796 = vpack.c.b16 %v790, %v789
        %v797 = vpack.c.b16 %v792, %v791
        %v798 = vpack.c.b16 %v794, %v793
        %803 = vst [vmem:[#allocation2 + $0xc0] sm:$0xff] %v795
        %804 = vst [vmem:[#allocation2 + $0xc8] sm:$0xff] %v796
        %805 = vst [vmem:[#allocation2 + $0xd0] sm:$0xff] %v797
        %806 = vst [vmem:[#allocation2 + $0xd8] sm:$0xff] %v798
        %807 = vrot.lane.b32.xlu0 %v405, 112
        %v808 = vpop.permute.xlu0 %807
        %809 = vrot.lane.b32.xlu0 %v407, 112
        %v810 = vpop.permute.xlu0 %809
        %811 = vrot.lane.b32.xlu0 %v409, 112
        %v812 = vpop.permute.xlu0 %811
        %813 = vrot.lane.b32.xlu0 %v411, 112
        %v814 = vpop.permute.xlu0 %813
        %815 = vrot.lane.b32.xlu0 %v406, 112
        %v816 = vpop.permute.xlu0 %815
        %817 = vrot.lane.b32.xlu0 %v408, 112
        %v818 = vpop.permute.xlu0 %817
        %819 = vrot.lane.b32.xlu0 %v410, 112
        %v820 = vpop.permute.xlu0 %819
        %821 = vrot.lane.b32.xlu0 %v412, 112
        %v822 = vpop.permute.xlu0 %821
        %vm823 = vcmp.lt.s32.totalorder %v363, 112
        %v824 = vsel %vm823, %v808, %v816
        %v825 = vsel %vm823, %v810, %v818
        %v826 = vsel %vm823, %v812, %v820
        %v827 = vsel %vm823, %v814, %v822
        %v828 = vsel %vm823, %v816, %v808
        %v829 = vsel %vm823, %v818, %v810
        %v830 = vsel %vm823, %v820, %v812
        %v831 = vsel %vm823, %v822, %v814
        %v832 = vsel %vm399, %v824, 0.0
        %v833 = vsel %vm400, %v828, 0.0
        %v834 = vsel %vm399, %v825, 0.0
        %v835 = vsel %vm400, %v829, 0.0
        %v836 = vsel %vm399, %v826, 0.0
        %v837 = vsel %vm400, %v830, 0.0
        %v838 = vsel %vm399, %v827, 0.0
        %v839 = vsel %vm400, %v831, 0.0
        %v840 = vpack.c.bf16 %v834, %v832
        %v841 = vpack.c.bf16 %v835, %v833
        %v842 = vpack.c.bf16 %v838, %v836
        %v843 = vpack.c.bf16 %v839, %v837
        %v848 = vunpack.c.l.b16 %v840
        %v849 = vunpack.c.l.b16 %v841
        %v850 = vunpack.c.h.b16 %v840
        %v851 = vunpack.c.h.b16 %v841
        %v852 = vunpack.c.l.b16 %v842
        %v853 = vunpack.c.l.b16 %v843
        %v854 = vunpack.c.h.b16 %v842
        %v855 = vunpack.c.h.b16 %v843
        %v856 = vpack.c.b16 %v849, %v848
        %v857 = vpack.c.b16 %v851, %v850
        %v858 = vpack.c.b16 %v853, %v852
        %v859 = vpack.c.b16 %v855, %v854
        %864 = vst [vmem:[#allocation2 + $0xe0] sm:$0xff] %v856
        %865 = vst [vmem:[#allocation2 + $0xe8] sm:$0xff] %v857
        %866 = vst [vmem:[#allocation2 + $0xf0] sm:$0xff] %v858
        %867 = vst [vmem:[#allocation2 + $0xf8] sm:$0xff] %v859
        %868 = vrot.lane.b32.xlu0 %v405, 111
        %v869 = vpop.permute.xlu0 %868
        %870 = vrot.lane.b32.xlu0 %v407, 111
        %v871 = vpop.permute.xlu0 %870
        %872 = vrot.lane.b32.xlu0 %v409, 111
        %v873 = vpop.permute.xlu0 %872
        %874 = vrot.lane.b32.xlu0 %v411, 111
        %v875 = vpop.permute.xlu0 %874
        %876 = vrot.lane.b32.xlu0 %v406, 111
        %v877 = vpop.permute.xlu0 %876
        %878 = vrot.lane.b32.xlu0 %v408, 111
        %v879 = vpop.permute.xlu0 %878
        %880 = vrot.lane.b32.xlu0 %v410, 111
        %v881 = vpop.permute.xlu0 %880
        %882 = vrot.lane.b32.xlu0 %v412, 111
        %v883 = vpop.permute.xlu0 %882
        %vm884 = vcmp.lt.s32.totalorder %v363, 111
        %v885 = vsel %vm884, %v869, %v877
        %v886 = vsel %vm884, %v871, %v879
        %v887 = vsel %vm884, %v873, %v881
        %v888 = vsel %vm884, %v875, %v883
        %v889 = vsel %vm884, %v877, %v869
        %v890 = vsel %vm884, %v879, %v871
        %v891 = vsel %vm884, %v881, %v873
        %v892 = vsel %vm884, %v883, %v875
        %v893 = vsel %vm403, %v885, 0.0
        %v894 = vsel %vm404, %v889, 0.0
        %v895 = vsel %vm403, %v886, 0.0
        %v896 = vsel %vm404, %v890, 0.0
        %v897 = vsel %vm403, %v887, 0.0
        %v898 = vsel %vm404, %v891, 0.0
        %v899 = vsel %vm403, %v888, 0.0
        %v900 = vsel %vm404, %v892, 0.0
        %v901 = vpack.c.bf16 %v895, %v893
        %v902 = vpack.c.bf16 %v896, %v894
        %v903 = vpack.c.bf16 %v899, %v897
        %v904 = vpack.c.bf16 %v900, %v898
        %v909 = vunpack.c.l.b16 %v901
        %v910 = vunpack.c.l.b16 %v902
        %v911 = vunpack.c.h.b16 %v901
        %v912 = vunpack.c.h.b16 %v902
        %v913 = vunpack.c.l.b16 %v903
        %v914 = vunpack.c.l.b16 %v904
        %v915 = vunpack.c.h.b16 %v903
        %v916 = vunpack.c.h.b16 %v904
        %v917 = vpack.c.b16 %v910, %v909
        %v918 = vpack.c.b16 %v912, %v911
        %v919 = vpack.c.b16 %v914, %v913
        %v920 = vpack.c.b16 %v916, %v915
        %925 = vst [vmem:[#allocation2 + $0x100] sm:$0xff] %v917
        %926 = vst [vmem:[#allocation2 + $0x108] sm:$0xff] %v918
        %927 = vst [vmem:[#allocation2 + $0x110] sm:$0xff] %v919
        %928 = vst [vmem:[#allocation2 + $0x118] sm:$0xff] %v920
        %v929 = vld [vmem:[#allocation3] sm:$0xff]
        %v930 = vld [vmem:[#allocation3 + $0x8] sm:$0xf]
        %v931 = vld [vmem:[#allocation3 + $0xc] sm:$0xff]
        %v932 = vld [vmem:[#allocation3 + $0x14] sm:$0xf]
        %v933 = vld [vmem:[#allocation3 + $0x18] sm:$0xff]
        %v934 = vld [vmem:[#allocation3 + $0x20] sm:$0xf]
        %v935 = vld [vmem:[#allocation3 + $0x24] sm:$0xff]
        %v936 = vld [vmem:[#allocation3 + $0x2c] sm:$0xf]
        %v937 = vld [vmem:[#allocation2] sm:$0xff]
        %v938 = vld [vmem:[#allocation2 + $0x8] sm:$0xff]
        %v939 = vld [vmem:[#allocation2 + $0x10] sm:$0xff]
        %v940 = vld [vmem:[#allocation2 + $0x18] sm:$0xff]
        %v941 = vld [vmem:[#allocation2 + $0x20] sm:$0xff]
        %v942 = vld [vmem:[#allocation2 + $0x28] sm:$0xff]
        %v943 = vld [vmem:[#allocation2 + $0x30] sm:$0xff]
        %v944 = vld [vmem:[#allocation2 + $0x38] sm:$0xff]
        %v945 = vld [vmem:[#allocation2 + $0x40] sm:$0xff]
        %v946 = vld [vmem:[#allocation2 + $0x48] sm:$0xff]
        %v947 = vld [vmem:[#allocation2 + $0x50] sm:$0xff]
        %v948 = vld [vmem:[#allocation2 + $0x58] sm:$0xff]
        %v949 = vld [vmem:[#allocation2 + $0x60] sm:$0xff]
        %v950 = vld [vmem:[#allocation2 + $0x68] sm:$0xff]
        %v951 = vld [vmem:[#allocation2 + $0x70] sm:$0xff]
        %v952 = vld [vmem:[#allocation2 + $0x78] sm:$0xff]
        %v953 = vld [vmem:[#allocation2 + $0x80] sm:$0xff]
        %v954 = vld [vmem:[#allocation2 + $0x88] sm:$0xff]
        %v955 = vld [vmem:[#allocation2 + $0x90] sm:$0xff]
        %v956 = vld [vmem:[#allocation2 + $0x98] sm:$0xff]
        %v957 = vld [vmem:[#allocation2 + $0xa0] sm:$0xff]
        %v958 = vld [vmem:[#allocation2 + $0xa8] sm:$0xff]
        %v959 = vld [vmem:[#allocation2 + $0xb0] sm:$0xff]
        %v960 = vld [vmem:[#allocation2 + $0xb8] sm:$0xff]
        %v961 = vld [vmem:[#allocation2 + $0xc0] sm:$0xff]
        %v962 = vld [vmem:[#allocation2 + $0xc8] sm:$0xff]
        %v963 = vld [vmem:[#allocation2 + $0xd0] sm:$0xff]
        %v964 = vld [vmem:[#allocation2 + $0xd8] sm:$0xff]
        %v965 = vld [vmem:[#allocation2 + $0xe0] sm:$0xff]
        %v966 = vld [vmem:[#allocation2 + $0xe8] sm:$0xff]
        %v967 = vld [vmem:[#allocation2 + $0xf0] sm:$0xff]
        %v968 = vld [vmem:[#allocation2 + $0xf8] sm:$0xff]
        %v969 = vld [vmem:[#allocation2 + $0x100] sm:$0xff]
        %v970 = vld [vmem:[#allocation2 + $0x108] sm:$0xff]
        %v971 = vld [vmem:[#allocation2 + $0x110] sm:$0xff]
        %v972 = vld [vmem:[#allocation2 + $0x118] sm:$0xff]
        %v973 = vld [vmem:[%s2] sm:$0xff]
        %v974 = vld [vmem:[%s2 + $0x8] sm:$0xff]
        %v975 = vld [vmem:[%s2 + $0x10] sm:$0xff]
        %v976 = vld [vmem:[%s2 + $0x18] sm:$0xff]
        %978 = vset.pattern.permute.xlu0 0
        %979 = vperm.xlu0 %978, %v973
        %v980 = vpop.permute.xlu0 %979
        %983 = vset.pattern.permute.xlu0 0
        %984 = vperm.xlu0 %983, %v974
        %v985 = vpop.permute.xlu0 %984
        %988 = vset.pattern.permute.xlu0 0
        %989 = vperm.xlu0 %988, %v975
        %v990 = vpop.permute.xlu0 %989
        %993 = vset.pattern.permute.xlu0 0
        %994 = vperm.xlu0 %993, %v976
        %v995 = vpop.permute.xlu0 %994
        %v1005 = vunpack.c.l.b16 %v929
        %v1006 = vunpack.c.h.b16 %v929
        %v1007 = vunpack.c.l.b16 %v930
        %v1008 = vunpack.c.l.b16 %v931
        %v1009 = vunpack.c.h.b16 %v931
        %v1010 = vunpack.c.l.b16 %v932
        %v1011 = vunpack.c.l.b16 %v933
        %v1012 = vunpack.c.h.b16 %v933
        %v1013 = vunpack.c.l.b16 %v934
        %v1014 = vunpack.c.l.b16 %v935
        %v1015 = vunpack.c.h.b16 %v935
        %v1016 = vunpack.c.l.b16 %v936
        %v1017 = vpack.c.b16 %v1008, %v1005
        %v1018 = vpack.c.b16 %v1009, %v1006
        %v1019 = vpack.c.b16 %v1010, %v1007
        %v1020 = vpack.c.b16 %v1014, %v1011
        %v1021 = vpack.c.b16 %v1015, %v1012
        %v1022 = vpack.c.b16 %v1016, %v1013
        %v1063 = vunpack.c.l.b16 %v937
        %v1064 = vunpack.c.h.b16 %v937
        %v1065 = vunpack.c.l.b16 %v938
        %v1066 = vunpack.c.h.b16 %v938
        %v1067 = vunpack.c.l.b16 %v939
        %v1068 = vunpack.c.h.b16 %v939
        %v1069 = vunpack.c.l.b16 %v940
        %v1070 = vunpack.c.h.b16 %v940
        %v1071 = vunpack.c.l.b16 %v941
        %v1072 = vunpack.c.h.b16 %v941
        %v1073 = vunpack.c.l.b16 %v942
        %v1074 = vunpack.c.h.b16 %v942
        %v1075 = vunpack.c.l.b16 %v943
        %v1076 = vunpack.c.h.b16 %v943
        %v1077 = vunpack.c.l.b16 %v944
        %v1078 = vunpack.c.h.b16 %v944
        %v1079 = vunpack.c.l.b16 %v945
        %v1080 = vunpack.c.h.b16 %v945
        %v1081 = vunpack.c.l.b16 %v946
        %v1082 = vunpack.c.h.b16 %v946
        %v1083 = vunpack.c.l.b16 %v947
        %v1084 = vunpack.c.h.b16 %v947
        %v1085 = vunpack.c.l.b16 %v948
        %v1086 = vunpack.c.h.b16 %v948
        %v1087 = vunpack.c.l.b16 %v949
        %v1088 = vunpack.c.h.b16 %v949
        %v1089 = vunpack.c.l.b16 %v950
        %v1090 = vunpack.c.h.b16 %v950
        %v1091 = vunpack.c.l.b16 %v951
        %v1092 = vunpack.c.h.b16 %v951
        %v1093 = vunpack.c.l.b16 %v952
        %v1094 = vunpack.c.h.b16 %v952
        %v1095 = vunpack.c.l.b16 %v953
        %v1096 = vunpack.c.h.b16 %v953
        %v1097 = vunpack.c.l.b16 %v954
        %v1098 = vunpack.c.h.b16 %v954
        %v1099 = vunpack.c.l.b16 %v955
        %v1100 = vunpack.c.h.b16 %v955
        %v1101 = vunpack.c.l.b16 %v956
        %v1102 = vunpack.c.h.b16 %v956
        %v1103 = vunpack.c.l.b16 %v957
        %v1104 = vunpack.c.h.b16 %v957
        %v1105 = vunpack.c.l.b16 %v958
        %v1106 = vunpack.c.h.b16 %v958
        %v1107 = vunpack.c.l.b16 %v959
        %v1108 = vunpack.c.h.b16 %v959
        %v1109 = vunpack.c.l.b16 %v960
        %v1110 = vunpack.c.h.b16 %v960
        %v1111 = vunpack.c.l.b16 %v961
        %v1112 = vunpack.c.h.b16 %v961
        %v1113 = vunpack.c.l.b16 %v962
        %v1114 = vunpack.c.h.b16 %v962
        %v1115 = vunpack.c.l.b16 %v963
        %v1116 = vunpack.c.h.b16 %v963
        %v1117 = vunpack.c.l.b16 %v964
        %v1118 = vunpack.c.h.b16 %v964
        %v1119 = vunpack.c.l.b16 %v965
        %v1120 = vunpack.c.h.b16 %v965
        %v1121 = vunpack.c.l.b16 %v966
        %v1122 = vunpack.c.h.b16 %v966
        %v1123 = vunpack.c.l.b16 %v967
        %v1124 = vunpack.c.h.b16 %v967
        %v1125 = vunpack.c.l.b16 %v968
        %v1126 = vunpack.c.h.b16 %v968
        %v1127 = vunpack.c.l.b16 %v969
        %v1128 = vunpack.c.h.b16 %v969
        %v1129 = vunpack.c.l.b16 %v970
        %v1130 = vunpack.c.h.b16 %v970
        %v1131 = vunpack.c.l.b16 %v971
        %v1132 = vunpack.c.h.b16 %v971
        %v1133 = vunpack.c.l.b16 %v972
        %v1134 = vunpack.c.h.b16 %v972
        %v1135 = vpack.c.b16 %v1065, %v1063
        %v1136 = vpack.c.b16 %v1066, %v1064
        %v1137 = vpack.c.b16 %v1069, %v1067
        %v1138 = vpack.c.b16 %v1070, %v1068
        %v1139 = vpack.c.b16 %v1073, %v1071
        %v1140 = vpack.c.b16 %v1074, %v1072
        %v1141 = vpack.c.b16 %v1077, %v1075
        %v1142 = vpack.c.b16 %v1078, %v1076
        %v1143 = vpack.c.b16 %v1081, %v1079
        %v1144 = vpack.c.b16 %v1082, %v1080
        %v1145 = vpack.c.b16 %v1085, %v1083
        %v1146 = vpack.c.b16 %v1086, %v1084
        %v1147 = vpack.c.b16 %v1089, %v1087
        %v1148 = vpack.c.b16 %v1090, %v1088
        %v1149 = vpack.c.b16 %v1093, %v1091
        %v1150 = vpack.c.b16 %v1094, %v1092
        %v1151 = vpack.c.b16 %v1097, %v1095
        %v1152 = vpack.c.b16 %v1098, %v1096
        %v1153 = vpack.c.b16 %v1101, %v1099
        %v1154 = vpack.c.b16 %v1102, %v1100
        %v1155 = vpack.c.b16 %v1105, %v1103
        %v1156 = vpack.c.b16 %v1106, %v1104
        %v1157 = vpack.c.b16 %v1109, %v1107
        %v1158 = vpack.c.b16 %v1110, %v1108
        %v1159 = vpack.c.b16 %v1113, %v1111
        %v1160 = vpack.c.b16 %v1114, %v1112
        %v1161 = vpack.c.b16 %v1117, %v1115
        %v1162 = vpack.c.b16 %v1118, %v1116
        %v1163 = vpack.c.b16 %v1121, %v1119
        %v1164 = vpack.c.b16 %v1122, %v1120
        %v1165 = vpack.c.b16 %v1125, %v1123
        %v1166 = vpack.c.b16 %v1126, %v1124
        %v1167 = vpack.c.b16 %v1129, %v1127
        %v1168 = vpack.c.b16 %v1130, %v1128
        %v1169 = vpack.c.b16 %v1133, %v1131
        %v1170 = vpack.c.b16 %v1134, %v1132
        %vm1207 = vcmask 261120
        %v1209 = vsel %vm1207, %v1019, 0
        %v1212 = vsel %vm1207, %v1022, 0
        %1214 = vmatprep.subr.bf16.mxu0 %v1150
        %1215 = vmatpush1.bf16.msra.mxu0 %v1149
        %1216 = vmatprep.subr.bf16.mxu0 %v1148
        %1217 = vmatpush1.bf16.msra.mxu0 %v1147
        %1218 = vmatprep.subr.bf16.mxu0 %v1146
        %1219 = vmatpush1.bf16.msra.mxu0 %v1145
        %1220 = vmatprep.subr.bf16.mxu0 %v1144
        %1221 = vmatpush1.bf16.msra.mxu0 %v1143
        %1222 = vmatprep.subr.bf16.mxu0 %v1142
        %1223 = vmatpush1.bf16.msra.mxu0 %v1141
        %1224 = vmatprep.subr.bf16.mxu0 %v1140
        %1225 = vmatpush1.bf16.msra.mxu0 %v1139
        %1226 = vmatprep.subr.bf16.mxu0 %v1138
        %1227 = vmatpush1.bf16.msra.mxu0 %v1137
        %1228 = vmatprep.subr.bf16.mxu0 %v1136
        %1229 = vmatpush1.bf16.msra.mxu0 %v1135
        %1230 = vmatprep.subr.bf16.mxu0 %v1166
        %1231 = vmatpush2.bf16.msra.mxu0 %v1165
        %1232 = vmatprep.subr.bf16.mxu0 %v1164
        %1233 = vmatpush2.bf16.msra.mxu0 %v1163
        %1234 = vmatprep.subr.bf16.mxu0 %v1162
        %1235 = vmatpush2.bf16.msra.mxu0 %v1161
        %1236 = vmatprep.subr.bf16.mxu0 %v1160
        %1237 = vmatpush2.bf16.msra.mxu0 %v1159
        %1238 = vmatprep.subr.bf16.mxu0 %v1158
        %1239 = vmatpush2.bf16.msra.mxu0 %v1157
        %1240 = vmatprep.subr.bf16.mxu0 %v1156
        %1241 = vmatpush2.bf16.msra.mxu0 %v1155
        %1242 = vmatprep.subr.bf16.mxu0 %v1154
        %1243 = vmatpush2.bf16.msra.mxu0 %v1153
        %1244 = vmatprep.subr.bf16.mxu0 %v1152
        %1245 = vmatpush2.bf16.msra.mxu0 %v1151
        %1246 = vmatprep.mubr.bf16.mxu0 %v1018
        %1247 = vmatmul.mubr.bf16.gmra.mxu0 %v1017
        %v1248 = vpop.f32.mrf.mxu0
        %v1249 = vadd.f32 %v980, %v1248
        %v1250 = vpop.f32.mrf.mxu0
        %v1251 = vadd.f32 %v980, %v1250
        %v1252 = vpop.f32.mrf.mxu0
        %v1253 = vadd.f32 %v985, %v1252
        %v1254 = vpop.f32.mrf.mxu0
        %v1255 = vadd.f32 %v985, %v1254
        %1256 = vmatprep.mubr.bf16.mxu0 %v1021
        %1257 = vmatmul.mubr.bf16.gmra.mxu0 %v1020
        %v1258 = vpop.f32.mrf.mxu0
        %v1259 = vadd.f32 %v990, %v1258
        %v1260 = vpop.f32.mrf.mxu0
        %v1261 = vadd.f32 %v990, %v1260
        %v1262 = vpop.f32.mrf.mxu0
        %v1263 = vadd.f32 %v995, %v1262
        %v1264 = vpop.f32.mrf.mxu0
        %v1265 = vadd.f32 %v995, %v1264
        %1266 = vdwg.mxu0
        %1267 = vmatprep.subr.bf16.mxu0 0
        %1268 = vmatpush1.bf16.msra.mxu0 0
        %1269 = vmatprep.subr.bf16.mxu0 0
        %1270 = vmatpush1.bf16.msra.mxu0 0
        %1271 = vmatprep.subr.bf16.mxu0 0
        %1272 = vmatpush1.bf16.msra.mxu0 0
        %1273 = vmatprep.subr.bf16.mxu0 0
        %1274 = vmatpush1.bf16.msra.mxu0 0
        %1275 = vmatprep.subr.bf16.mxu0 0
        %1276 = vmatpush1.bf16.msra.mxu0 0
        %1277 = vmatprep.subr.bf16.mxu0 0
        %1278 = vmatpush1.bf16.msra.mxu0 0
        %1279 = vmatprep.subr.bf16.mxu0 %v1170
        %1280 = vmatpush1.bf16.msra.mxu0 %v1169
        %1281 = vmatprep.subr.bf16.mxu0 %v1168
        %1282 = vmatpush1.bf16.msra.mxu0 %v1167
        %1283 = vmatprep.subr.bf16.mxu0 0
        %1284 = vmatpush2.bf16.msra.mxu0 0
        %1285 = vmatprep.subr.bf16.mxu0 0
        %1286 = vmatpush2.bf16.msra.mxu0 0
        %1287 = vmatprep.subr.bf16.mxu0 0
        %1288 = vmatpush2.bf16.msra.mxu0 0
        %1289 = vmatprep.subr.bf16.mxu0 0
        %1290 = vmatpush2.bf16.msra.mxu0 0
        %1291 = vmatprep.subr.bf16.mxu0 0
        %1292 = vmatpush2.bf16.msra.mxu0 0
        %1293 = vmatprep.subr.bf16.mxu0 0
        %1294 = vmatpush2.bf16.msra.mxu0 0
        %1295 = vmatprep.subr.bf16.mxu0 0
        %1296 = vmatpush2.bf16.msra.mxu0 0
        %1297 = vmatprep.subr.bf16.mxu0 0
        %1298 = vmatpush2.bf16.msra.mxu0 0
        %1299 = vmatprep.mubr.bf16.mxu0 0
        %1300 = vmatmul.mubr.bf16.gmra.mxu0 %v1209
        %v1301 = vpop.f32.mrf.mxu0
        %v1302 = vadd.f32 %v1249, %v1301
        %v1303 = vpop.f32.mrf.mxu0
        %v1304 = vadd.f32 %v1251, %v1303
        %v1305 = vpop.f32.mrf.mxu0
        %v1306 = vadd.f32 %v1253, %v1305
        %v1307 = vpop.f32.mrf.mxu0
        %v1308 = vadd.f32 %v1255, %v1307
        %1309 = vmatprep.mubr.bf16.mxu0 0
        %1310 = vmatmul.mubr.bf16.gmra.mxu0 %v1212
        %v1311 = vpop.f32.mrf.mxu0
        %v1312 = vadd.f32 %v1259, %v1311
        %v1313 = vpop.f32.mrf.mxu0
        %v1314 = vadd.f32 %v1261, %v1313
        %v1315 = vpop.f32.mrf.mxu0
        %v1316 = vadd.f32 %v1263, %v1315
        %v1317 = vpop.f32.mrf.mxu0
        %v1318 = vadd.f32 %v1265, %v1317
        %1319 = vdwg.mxu0
        %v1320 = vmax.f32 %v1302, 0.0
        %v1321 = vmax.f32 %v1304, 0.0
        %v1322 = vmax.f32 %v1306, 0.0
        %v1323 = vmax.f32 %v1308, 0.0
        %v1324 = vmax.f32 %v1312, 0.0
        %v1325 = vmax.f32 %v1314, 0.0
        %v1326 = vmax.f32 %v1316, 0.0
        %v1327 = vmax.f32 %v1318, 0.0
        %1328 = vrot.lane.b32.xlu0 %v1320, 17
        %v1329 = vpop.permute.xlu0 %1328
        %1330 = vrot.lane.b32.xlu0 %v1322, 17
        %v1331 = vpop.permute.xlu0 %1330
        %1332 = vrot.lane.b32.xlu0 %v1324, 17
        %v1333 = vpop.permute.xlu0 %1332
        %1334 = vrot.lane.b32.xlu0 %v1326, 17
        %v1335 = vpop.permute.xlu0 %1334
        %1336 = vrot.lane.b32.xlu0 %v1321, 17
        %v1337 = vpop.permute.xlu0 %1336
        %1338 = vrot.lane.b32.xlu0 %v1323, 17
        %v1339 = vpop.permute.xlu0 %1338
        %1340 = vrot.lane.b32.xlu0 %v1325, 17
        %v1341 = vpop.permute.xlu0 %1340
        %1342 = vrot.lane.b32.xlu0 %v1327, 17
        %v1343 = vpop.permute.xlu0 %1342
        %v1344 = vsel %vm429, %v1329, %v1337
        %v1345 = vsel %vm429, %v1331, %v1339
        %v1346 = vsel %vm429, %v1333, %v1341
        %v1347 = vsel %vm429, %v1335, %v1343
        %v1348 = vsel %vm429, %v1337, %v1329
        %v1349 = vsel %vm429, %v1339, %v1331
        %v1350 = vsel %vm429, %v1341, %v1333
        %v1351 = vsel %vm429, %v1343, %v1335
        %v1352 = vsel %vm393, %v1348, 0.0
        %v1353 = vsel %vm394, %v1344, 0.0
        %v1354 = vsel %vm393, %v1349, 0.0
        %v1355 = vsel %vm394, %v1345, 0.0
        %v1356 = vsel %vm393, %v1350, 0.0
        %v1357 = vsel %vm394, %v1346, 0.0
        %v1358 = vsel %vm393, %v1351, 0.0
        %v1359 = vsel %vm394, %v1347, 0.0
        %v1360 = vpack.c.bf16 %v1354, %v1352
        %v1361 = vpack.c.bf16 %v1355, %v1353
        %v1362 = vpack.c.bf16 %v1358, %v1356
        %v1363 = vpack.c.bf16 %v1359, %v1357
        %v1368 = vunpack.c.l.b16 %v1360
        %v1369 = vunpack.c.l.b16 %v1361
        %v1370 = vunpack.c.h.b16 %v1360
        %v1371 = vunpack.c.h.b16 %v1361
        %v1372 = vunpack.c.l.b16 %v1362
        %v1373 = vunpack.c.l.b16 %v1363
        %v1374 = vunpack.c.h.b16 %v1362
        %v1375 = vunpack.c.h.b16 %v1363
        %v1376 = vpack.c.b16 %v1369, %v1368
        %v1377 = vpack.c.b16 %v1371, %v1370
        %v1378 = vpack.c.b16 %v1373, %v1372
        %v1379 = vpack.c.b16 %v1375, %v1374
        %1384 = vst [vmem:[#allocation2] sm:$0xff] %v1376
        %1385 = vst [vmem:[#allocation2 + $0x8] sm:$0xff] %v1377
        %1386 = vst [vmem:[#allocation2 + $0x10] sm:$0xff] %v1378
        %1387 = vst [vmem:[#allocation2 + $0x18] sm:$0xff] %v1379
        %1388 = vrot.lane.b32.xlu0 %v1320, 16
        %v1389 = vpop.permute.xlu0 %1388
        %1390 = vrot.lane.b32.xlu0 %v1322, 16
        %v1391 = vpop.permute.xlu0 %1390
        %1392 = vrot.lane.b32.xlu0 %v1324, 16
        %v1393 = vpop.permute.xlu0 %1392
        %1394 = vrot.lane.b32.xlu0 %v1326, 16
        %v1395 = vpop.permute.xlu0 %1394
        %1396 = vrot.lane.b32.xlu0 %v1321, 16
        %v1397 = vpop.permute.xlu0 %1396
        %1398 = vrot.lane.b32.xlu0 %v1323, 16
        %v1399 = vpop.permute.xlu0 %1398
        %1400 = vrot.lane.b32.xlu0 %v1325, 16
        %v1401 = vpop.permute.xlu0 %1400
        %1402 = vrot.lane.b32.xlu0 %v1327, 16
        %v1403 = vpop.permute.xlu0 %1402
        %v1404 = vsel %vm490, %v1389, %v1397
        %v1405 = vsel %vm490, %v1391, %v1399
        %v1406 = vsel %vm490, %v1393, %v1401
        %v1407 = vsel %vm490, %v1395, %v1403
        %v1408 = vsel %vm490, %v1397, %v1389
        %v1409 = vsel %vm490, %v1399, %v1391
        %v1410 = vsel %vm490, %v1401, %v1393
        %v1411 = vsel %vm490, %v1403, %v1395
        %v1412 = vsel %vm391, %v1408, 0.0
        %v1413 = vsel %vm392, %v1404, 0.0
        %v1414 = vsel %vm391, %v1409, 0.0
        %v1415 = vsel %vm392, %v1405, 0.0
        %v1416 = vsel %vm391, %v1410, 0.0
        %v1417 = vsel %vm392, %v1406, 0.0
        %v1418 = vsel %vm391, %v1411, 0.0
        %v1419 = vsel %vm392, %v1407, 0.0
        %v1420 = vpack.c.bf16 %v1414, %v1412
        %v1421 = vpack.c.bf16 %v1415, %v1413
        %v1422 = vpack.c.bf16 %v1418, %v1416
        %v1423 = vpack.c.bf16 %v1419, %v1417
        %v1428 = vunpack.c.l.b16 %v1420
        %v1429 = vunpack.c.l.b16 %v1421
        %v1430 = vunpack.c.h.b16 %v1420
        %v1431 = vunpack.c.h.b16 %v1421
        %v1432 = vunpack.c.l.b16 %v1422
        %v1433 = vunpack.c.l.b16 %v1423
        %v1434 = vunpack.c.h.b16 %v1422
        %v1435 = vunpack.c.h.b16 %v1423
        %v1436 = vpack.c.b16 %v1429, %v1428
        %v1437 = vpack.c.b16 %v1431, %v1430
        %v1438 = vpack.c.b16 %v1433, %v1432
        %v1439 = vpack.c.b16 %v1435, %v1434
        %1444 = vst [vmem:[#allocation2 + $0x20] sm:$0xff] %v1436
        %1445 = vst [vmem:[#allocation2 + $0x28] sm:$0xff] %v1437
        %1446 = vst [vmem:[#allocation2 + $0x30] sm:$0xff] %v1438
        %1447 = vst [vmem:[#allocation2 + $0x38] sm:$0xff] %v1439
        %1448 = vrot.lane.b32.xlu0 %v1320, 15
        %v1449 = vpop.permute.xlu0 %1448
        %1450 = vrot.lane.b32.xlu0 %v1322, 15
        %v1451 = vpop.permute.xlu0 %1450
        %1452 = vrot.lane.b32.xlu0 %v1324, 15
        %v1453 = vpop.permute.xlu0 %1452
        %1454 = vrot.lane.b32.xlu0 %v1326, 15
        %v1455 = vpop.permute.xlu0 %1454
        %1456 = vrot.lane.b32.xlu0 %v1321, 15
        %v1457 = vpop.permute.xlu0 %1456
        %1458 = vrot.lane.b32.xlu0 %v1323, 15
        %v1459 = vpop.permute.xlu0 %1458
        %1460 = vrot.lane.b32.xlu0 %v1325, 15
        %v1461 = vpop.permute.xlu0 %1460
        %1462 = vrot.lane.b32.xlu0 %v1327, 15
        %v1463 = vpop.permute.xlu0 %1462
        %v1464 = vsel %vm551, %v1449, %v1457
        %v1465 = vsel %vm551, %v1451, %v1459
        %v1466 = vsel %vm551, %v1453, %v1461
        %v1467 = vsel %vm551, %v1455, %v1463
        %v1468 = vsel %vm551, %v1457, %v1449
        %v1469 = vsel %vm551, %v1459, %v1451
        %v1470 = vsel %vm551, %v1461, %v1453
        %v1471 = vsel %vm551, %v1463, %v1455
        %v1472 = vsel %vm397, %v1468, 0.0
        %v1473 = vsel %vm398, %v1464, 0.0
        %v1474 = vsel %vm397, %v1469, 0.0
        %v1475 = vsel %vm398, %v1465, 0.0
        %v1476 = vsel %vm397, %v1470, 0.0
        %v1477 = vsel %vm398, %v1466, 0.0
        %v1478 = vsel %vm397, %v1471, 0.0
        %v1479 = vsel %vm398, %v1467, 0.0
        %v1480 = vpack.c.bf16 %v1474, %v1472
        %v1481 = vpack.c.bf16 %v1475, %v1473
        %v1482 = vpack.c.bf16 %v1478, %v1476
        %v1483 = vpack.c.bf16 %v1479, %v1477
        %v1488 = vunpack.c.l.b16 %v1480
        %v1489 = vunpack.c.l.b16 %v1481
        %v1490 = vunpack.c.h.b16 %v1480
        %v1491 = vunpack.c.h.b16 %v1481
        %v1492 = vunpack.c.l.b16 %v1482
        %v1493 = vunpack.c.l.b16 %v1483
        %v1494 = vunpack.c.h.b16 %v1482
        %v1495 = vunpack.c.h.b16 %v1483
        %v1496 = vpack.c.b16 %v1489, %v1488
        %v1497 = vpack.c.b16 %v1491, %v1490
        %v1498 = vpack.c.b16 %v1493, %v1492
        %v1499 = vpack.c.b16 %v1495, %v1494
        %1504 = vst [vmem:[#allocation2 + $0x40] sm:$0xff] %v1496
        %1505 = vst [vmem:[#allocation2 + $0x48] sm:$0xff] %v1497
        %1506 = vst [vmem:[#allocation2 + $0x50] sm:$0xff] %v1498
        %1507 = vst [vmem:[#allocation2 + $0x58] sm:$0xff] %v1499
        %1508 = vrot.lane.b32.xlu0 %v1320, 1
        %v1509 = vpop.permute.xlu0 %1508
        %1510 = vrot.lane.b32.xlu0 %v1322, 1
        %v1511 = vpop.permute.xlu0 %1510
        %1512 = vrot.lane.b32.xlu0 %v1324, 1
        %v1513 = vpop.permute.xlu0 %1512
        %1514 = vrot.lane.b32.xlu0 %v1326, 1
        %v1515 = vpop.permute.xlu0 %1514
        %1516 = vrot.lane.b32.xlu0 %v1321, 1
        %v1517 = vpop.permute.xlu0 %1516
        %1518 = vrot.lane.b32.xlu0 %v1323, 1
        %v1519 = vpop.permute.xlu0 %1518
        %1520 = vrot.lane.b32.xlu0 %v1325, 1
        %v1521 = vpop.permute.xlu0 %1520
        %1522 = vrot.lane.b32.xlu0 %v1327, 1
        %v1523 = vpop.permute.xlu0 %1522
        %v1524 = vsel %vm612, %v1509, %v1517
        %v1525 = vsel %vm612, %v1511, %v1519
        %v1526 = vsel %vm612, %v1513, %v1521
        %v1527 = vsel %vm612, %v1515, %v1523
        %v1528 = vsel %vm612, %v1517, %v1509
        %v1529 = vsel %vm612, %v1519, %v1511
        %v1530 = vsel %vm612, %v1521, %v1513
        %v1531 = vsel %vm612, %v1523, %v1515
        %v1532 = vsel %vm389, %v1528, 0.0
        %v1533 = vsel %vm390, %v1524, 0.0
        %v1534 = vsel %vm389, %v1529, 0.0
        %v1535 = vsel %vm390, %v1525, 0.0
        %v1536 = vsel %vm389, %v1530, 0.0
        %v1537 = vsel %vm390, %v1526, 0.0
        %v1538 = vsel %vm389, %v1531, 0.0
        %v1539 = vsel %vm390, %v1527, 0.0
        %v1540 = vpack.c.bf16 %v1534, %v1532
        %v1541 = vpack.c.bf16 %v1535, %v1533
        %v1542 = vpack.c.bf16 %v1538, %v1536
        %v1543 = vpack.c.bf16 %v1539, %v1537
        %v1548 = vunpack.c.l.b16 %v1540
        %v1549 = vunpack.c.l.b16 %v1541
        %v1550 = vunpack.c.h.b16 %v1540
        %v1551 = vunpack.c.h.b16 %v1541
        %v1552 = vunpack.c.l.b16 %v1542
        %v1553 = vunpack.c.l.b16 %v1543
        %v1554 = vunpack.c.h.b16 %v1542
        %v1555 = vunpack.c.h.b16 %v1543
        %v1556 = vpack.c.b16 %v1549, %v1548
        %v1557 = vpack.c.b16 %v1551, %v1550
        %v1558 = vpack.c.b16 %v1553, %v1552
        %v1559 = vpack.c.b16 %v1555, %v1554
        %1564 = vst [vmem:[#allocation2 + $0x60] sm:$0xff] %v1556
        %1565 = vst [vmem:[#allocation2 + $0x68] sm:$0xff] %v1557
        %1566 = vst [vmem:[#allocation2 + $0x70] sm:$0xff] %v1558
        %1567 = vst [vmem:[#allocation2 + $0x78] sm:$0xff] %v1559
        %v1568 = vpack.c.bf16 %v1322, %v1320
        %v1569 = vpack.c.bf16 %v1323, %v1321
        %v1570 = vpack.c.bf16 %v1326, %v1324
        %v1571 = vpack.c.bf16 %v1327, %v1325
        %v1576 = vunpack.c.l.b16 %v1568
        %v1577 = vunpack.c.l.b16 %v1569
        %v1578 = vunpack.c.h.b16 %v1568
        %v1579 = vunpack.c.h.b16 %v1569
        %v1580 = vunpack.c.l.b16 %v1570
        %v1581 = vunpack.c.l.b16 %v1571
        %v1582 = vunpack.c.h.b16 %v1570
        %v1583 = vunpack.c.h.b16 %v1571
        %v1584 = vpack.c.b16 %v1577, %v1576
        %v1585 = vpack.c.b16 %v1579, %v1578
        %v1586 = vpack.c.b16 %v1581, %v1580
        %v1587 = vpack.c.b16 %v1583, %v1582
        %1592 = vst [vmem:[#allocation2 + $0x80] sm:$0xff] %v1584
        %1593 = vst [vmem:[#allocation2 + $0x88] sm:$0xff] %v1585
        %1594 = vst [vmem:[#allocation2 + $0x90] sm:$0xff] %v1586
        %1595 = vst [vmem:[#allocation2 + $0x98] sm:$0xff] %v1587
        %1596 = vrot.lane.b32.xlu0 %v1320, 127
        %v1597 = vpop.permute.xlu0 %1596
        %1598 = vrot.lane.b32.xlu0 %v1322, 127
        %v1599 = vpop.permute.xlu0 %1598
        %1600 = vrot.lane.b32.xlu0 %v1324, 127
        %v1601 = vpop.permute.xlu0 %1600
        %1602 = vrot.lane.b32.xlu0 %v1326, 127
        %v1603 = vpop.permute.xlu0 %1602
        %1604 = vrot.lane.b32.xlu0 %v1321, 127
        %v1605 = vpop.permute.xlu0 %1604
        %1606 = vrot.lane.b32.xlu0 %v1323, 127
        %v1607 = vpop.permute.xlu0 %1606
        %1608 = vrot.lane.b32.xlu0 %v1325, 127
        %v1609 = vpop.permute.xlu0 %1608
        %1610 = vrot.lane.b32.xlu0 %v1327, 127
        %v1611 = vpop.permute.xlu0 %1610
        %v1612 = vsel %vm701, %v1597, %v1605
        %v1613 = vsel %vm701, %v1599, %v1607
        %v1614 = vsel %vm701, %v1601, %v1609
        %v1615 = vsel %vm701, %v1603, %v1611
        %v1616 = vsel %vm701, %v1605, %v1597
        %v1617 = vsel %vm701, %v1607, %v1599
        %v1618 = vsel %vm701, %v1609, %v1601
        %v1619 = vsel %vm701, %v1611, %v1603
        %v1620 = vsel %vm395, %v1612, 0.0
        %v1621 = vsel %vm396, %v1616, 0.0
        %v1622 = vsel %vm395, %v1613, 0.0
        %v1623 = vsel %vm396, %v1617, 0.0
        %v1624 = vsel %vm395, %v1614, 0.0
        %v1625 = vsel %vm396, %v1618, 0.0
        %v1626 = vsel %vm395, %v1615, 0.0
        %v1627 = vsel %vm396, %v1619, 0.0
        %v1628 = vpack.c.bf16 %v1622, %v1620
        %v1629 = vpack.c.bf16 %v1623, %v1621
        %v1630 = vpack.c.bf16 %v1626, %v1624
        %v1631 = vpack.c.bf16 %v1627, %v1625
        %v1636 = vunpack.c.l.b16 %v1628
        %v1637 = vunpack.c.l.b16 %v1629
        %v1638 = vunpack.c.h.b16 %v1628
        %v1639 = vunpack.c.h.b16 %v1629
        %v1640 = vunpack.c.l.b16 %v1630
        %v1641 = vunpack.c.l.b16 %v1631
        %v1642 = vunpack.c.h.b16 %v1630
        %v1643 = vunpack.c.h.b16 %v1631
        %v1644 = vpack.c.b16 %v1637, %v1636
        %v1645 = vpack.c.b16 %v1639, %v1638
        %v1646 = vpack.c.b16 %v1641, %v1640
        %v1647 = vpack.c.b16 %v1643, %v1642
        %1652 = vst [vmem:[#allocation2 + $0xa0] sm:$0xff] %v1644
        %1653 = vst [vmem:[#allocation2 + $0xa8] sm:$0xff] %v1645
        %1654 = vst [vmem:[#allocation2 + $0xb0] sm:$0xff] %v1646
        %1655 = vst [vmem:[#allocation2 + $0xb8] sm:$0xff] %v1647
        %1656 = vrot.lane.b32.xlu0 %v1320, 113
        %v1657 = vpop.permute.xlu0 %1656
        %1658 = vrot.lane.b32.xlu0 %v1322, 113
        %v1659 = vpop.permute.xlu0 %1658
        %1660 = vrot.lane.b32.xlu0 %v1324, 113
        %v1661 = vpop.permute.xlu0 %1660
        %1662 = vrot.lane.b32.xlu0 %v1326, 113
        %v1663 = vpop.permute.xlu0 %1662
        %1664 = vrot.lane.b32.xlu0 %v1321, 113
        %v1665 = vpop.permute.xlu0 %1664
        %1666 = vrot.lane.b32.xlu0 %v1323, 113
        %v1667 = vpop.permute.xlu0 %1666
        %1668 = vrot.lane.b32.xlu0 %v1325, 113
        %v1669 = vpop.permute.xlu0 %1668
        %1670 = vrot.lane.b32.xlu0 %v1327, 113
        %v1671 = vpop.permute.xlu0 %1670
        %v1672 = vsel %vm762, %v1657, %v1665
        %v1673 = vsel %vm762, %v1659, %v1667
        %v1674 = vsel %vm762, %v1661, %v1669
        %v1675 = vsel %vm762, %v1663, %v1671
        %v1676 = vsel %vm762, %v1665, %v1657
        %v1677 = vsel %vm762, %v1667, %v1659
        %v1678 = vsel %vm762, %v1669, %v1661
        %v1679 = vsel %vm762, %v1671, %v1663
        %v1680 = vsel %vm401, %v1672, 0.0
        %v1681 = vsel %vm402, %v1676, 0.0
        %v1682 = vsel %vm401, %v1673, 0.0
        %v1683 = vsel %vm402, %v1677, 0.0
        %v1684 = vsel %vm401, %v1674, 0.0
        %v1685 = vsel %vm402, %v1678, 0.0
        %v1686 = vsel %vm401, %v1675, 0.0
        %v1687 = vsel %vm402, %v1679, 0.0
        %v1688 = vpack.c.bf16 %v1682, %v1680
        %v1689 = vpack.c.bf16 %v1683, %v1681
        %v1690 = vpack.c.bf16 %v1686, %v1684
        %v1691 = vpack.c.bf16 %v1687, %v1685
        %v1696 = vunpack.c.l.b16 %v1688
        %v1697 = vunpack.c.l.b16 %v1689
        %v1698 = vunpack.c.h.b16 %v1688
        %v1699 = vunpack.c.h.b16 %v1689
        %v1700 = vunpack.c.l.b16 %v1690
        %v1701 = vunpack.c.l.b16 %v1691
        %v1702 = vunpack.c.h.b16 %v1690
        %v1703 = vunpack.c.h.b16 %v1691
        %v1704 = vpack.c.b16 %v1697, %v1696
        %v1705 = vpack.c.b16 %v1699, %v1698
        %v1706 = vpack.c.b16 %v1701, %v1700
        %v1707 = vpack.c.b16 %v1703, %v1702
        %1712 = vst [vmem:[#allocation2 + $0xc0] sm:$0xff] %v1704
        %1713 = vst [vmem:[#allocation2 + $0xc8] sm:$0xff] %v1705
        %1714 = vst [vmem:[#allocation2 + $0xd0] sm:$0xff] %v1706
        %1715 = vst [vmem:[#allocation2 + $0xd8] sm:$0xff] %v1707
        %1716 = vrot.lane.b32.xlu0 %v1320, 112
        %v1717 = vpop.permute.xlu0 %1716
        %1718 = vrot.lane.b32.xlu0 %v1322, 112
        %v1719 = vpop.permute.xlu0 %1718
        %1720 = vrot.lane.b32.xlu0 %v1324, 112
        %v1721 = vpop.permute.xlu0 %1720
        %1722 = vrot.lane.b32.xlu0 %v1326, 112
        %v1723 = vpop.permute.xlu0 %1722
        %1724 = vrot.lane.b32.xlu0 %v1321, 112
        %v1725 = vpop.permute.xlu0 %1724
        %1726 = vrot.lane.b32.xlu0 %v1323, 112
        %v1727 = vpop.permute.xlu0 %1726
        %1728 = vrot.lane.b32.xlu0 %v1325, 112
        %v1729 = vpop.permute.xlu0 %1728
        %1730 = vrot.lane.b32.xlu0 %v1327, 112
        %v1731 = vpop.permute.xlu0 %1730
        %v1732 = vsel %vm823, %v1717, %v1725
        %v1733 = vsel %vm823, %v1719, %v1727
        %v1734 = vsel %vm823, %v1721, %v1729
        %v1735 = vsel %vm823, %v1723, %v1731
        %v1736 = vsel %vm823, %v1725, %v1717
        %v1737 = vsel %vm823, %v1727, %v1719
        %v1738 = vsel %vm823, %v1729, %v1721
        %v1739 = vsel %vm823, %v1731, %v1723
        %v1740 = vsel %vm399, %v1732, 0.0
        %v1741 = vsel %vm400, %v1736, 0.0
        %v1742 = vsel %vm399, %v1733, 0.0
        %v1743 = vsel %vm400, %v1737, 0.0
        %v1744 = vsel %vm399, %v1734, 0.0
        %v1745 = vsel %vm400, %v1738, 0.0
        %v1746 = vsel %vm399, %v1735, 0.0
        %v1747 = vsel %vm400, %v1739, 0.0
        %v1748 = vpack.c.bf16 %v1742, %v1740
        %v1749 = vpack.c.bf16 %v1743, %v1741
        %v1750 = vpack.c.bf16 %v1746, %v1744
        %v1751 = vpack.c.bf16 %v1747, %v1745
        %v1756 = vunpack.c.l.b16 %v1748
        %v1757 = vunpack.c.l.b16 %v1749
        %v1758 = vunpack.c.h.b16 %v1748
        %v1759 = vunpack.c.h.b16 %v1749
        %v1760 = vunpack.c.l.b16 %v1750
        %v1761 = vunpack.c.l.b16 %v1751
        %v1762 = vunpack.c.h.b16 %v1750
        %v1763 = vunpack.c.h.b16 %v1751
        %v1764 = vpack.c.b16 %v1757, %v1756
        %v1765 = vpack.c.b16 %v1759, %v1758
        %v1766 = vpack.c.b16 %v1761, %v1760
        %v1767 = vpack.c.b16 %v1763, %v1762
        %1772 = vst [vmem:[#allocation2 + $0xe0] sm:$0xff] %v1764
        %1773 = vst [vmem:[#allocation2 + $0xe8] sm:$0xff] %v1765
        %1774 = vst [vmem:[#allocation2 + $0xf0] sm:$0xff] %v1766
        %1775 = vst [vmem:[#allocation2 + $0xf8] sm:$0xff] %v1767
        %1776 = vrot.lane.b32.xlu0 %v1320, 111
        %v1777 = vpop.permute.xlu0 %1776
        %1778 = vrot.lane.b32.xlu0 %v1322, 111
        %v1779 = vpop.permute.xlu0 %1778
        %1780 = vrot.lane.b32.xlu0 %v1324, 111
        %v1781 = vpop.permute.xlu0 %1780
        %1782 = vrot.lane.b32.xlu0 %v1326, 111
        %v1783 = vpop.permute.xlu0 %1782
        %1784 = vrot.lane.b32.xlu0 %v1321, 111
        %v1785 = vpop.permute.xlu0 %1784
        %1786 = vrot.lane.b32.xlu0 %v1323, 111
        %v1787 = vpop.permute.xlu0 %1786
        %1788 = vrot.lane.b32.xlu0 %v1325, 111
        %v1789 = vpop.permute.xlu0 %1788
        %1790 = vrot.lane.b32.xlu0 %v1327, 111
        %v1791 = vpop.permute.xlu0 %1790
        %v1792 = vsel %vm884, %v1777, %v1785
        %v1793 = vsel %vm884, %v1779, %v1787
        %v1794 = vsel %vm884, %v1781, %v1789
        %v1795 = vsel %vm884, %v1783, %v1791
        %v1796 = vsel %vm884, %v1785, %v1777
        %v1797 = vsel %vm884, %v1787, %v1779
        %v1798 = vsel %vm884, %v1789, %v1781
        %v1799 = vsel %vm884, %v1791, %v1783
        %v1800 = vsel %vm403, %v1792, 0.0
        %v1801 = vsel %vm404, %v1796, 0.0
        %v1802 = vsel %vm403, %v1793, 0.0
        %v1803 = vsel %vm404, %v1797, 0.0
        %v1804 = vsel %vm403, %v1794, 0.0
        %v1805 = vsel %vm404, %v1798, 0.0
        %v1806 = vsel %vm403, %v1795, 0.0
        %v1807 = vsel %vm404, %v1799, 0.0
        %v1808 = vpack.c.bf16 %v1802, %v1800
        %v1809 = vpack.c.bf16 %v1803, %v1801
        %v1810 = vpack.c.bf16 %v1806, %v1804
        %v1811 = vpack.c.bf16 %v1807, %v1805
        %v1816 = vunpack.c.l.b16 %v1808
        %v1817 = vunpack.c.l.b16 %v1809
        %v1818 = vunpack.c.h.b16 %v1808
        %v1819 = vunpack.c.h.b16 %v1809
        %v1820 = vunpack.c.l.b16 %v1810
        %v1821 = vunpack.c.l.b16 %v1811
        %v1822 = vunpack.c.h.b16 %v1810
        %v1823 = vunpack.c.h.b16 %v1811
        %v1824 = vpack.c.b16 %v1817, %v1816
        %v1825 = vpack.c.b16 %v1819, %v1818
        %v1826 = vpack.c.b16 %v1821, %v1820
        %v1827 = vpack.c.b16 %v1823, %v1822
        %1832 = vst [vmem:[#allocation2 + $0x100] sm:$0xff] %v1824
        %1833 = vst [vmem:[#allocation2 + $0x108] sm:$0xff] %v1825
        %1834 = vst [vmem:[#allocation2 + $0x110] sm:$0xff] %v1826
        %1835 = vst [vmem:[#allocation2 + $0x118] sm:$0xff] %v1827
        %v1836 = vld [vmem:[#allocation6] sm:$0xff]
        %v1837 = vld [vmem:[#allocation6 + $0x8] sm:$0xf]
        %v1838 = vld [vmem:[#allocation6 + $0xc] sm:$0xff]
        %v1839 = vld [vmem:[#allocation6 + $0x14] sm:$0xf]
        %v1840 = vld [vmem:[#allocation6 + $0x18] sm:$0xff]
        %v1841 = vld [vmem:[#allocation6 + $0x20] sm:$0xf]
        %v1842 = vld [vmem:[#allocation6 + $0x24] sm:$0xff]
        %v1843 = vld [vmem:[#allocation6 + $0x2c] sm:$0xf]
        %v1844 = vld [vmem:[#allocation2] sm:$0xff]
        %v1845 = vld [vmem:[#allocation2 + $0x8] sm:$0xff]
        %v1846 = vld [vmem:[#allocation2 + $0x10] sm:$0xff]
        %v1847 = vld [vmem:[#allocation2 + $0x18] sm:$0xff]
        %v1848 = vld [vmem:[#allocation2 + $0x20] sm:$0xff]
        %v1849 = vld [vmem:[#allocation2 + $0x28] sm:$0xff]
        %v1850 = vld [vmem:[#allocation2 + $0x30] sm:$0xff]
        %v1851 = vld [vmem:[#allocation2 + $0x38] sm:$0xff]
        %v1852 = vld [vmem:[#allocation2 + $0x40] sm:$0xff]
        %v1853 = vld [vmem:[#allocation2 + $0x48] sm:$0xff]
        %v1854 = vld [vmem:[#allocation2 + $0x50] sm:$0xff]
        %v1855 = vld [vmem:[#allocation2 + $0x58] sm:$0xff]
        %v1856 = vld [vmem:[#allocation2 + $0x60] sm:$0xff]
        %v1857 = vld [vmem:[#allocation2 + $0x68] sm:$0xff]
        %v1858 = vld [vmem:[#allocation2 + $0x70] sm:$0xff]
        %v1859 = vld [vmem:[#allocation2 + $0x78] sm:$0xff]
        %v1860 = vld [vmem:[#allocation2 + $0x80] sm:$0xff]
        %v1861 = vld [vmem:[#allocation2 + $0x88] sm:$0xff]
        %v1862 = vld [vmem:[#allocation2 + $0x90] sm:$0xff]
        %v1863 = vld [vmem:[#allocation2 + $0x98] sm:$0xff]
        %v1864 = vld [vmem:[#allocation2 + $0xa0] sm:$0xff]
        %v1865 = vld [vmem:[#allocation2 + $0xa8] sm:$0xff]
        %v1866 = vld [vmem:[#allocation2 + $0xb0] sm:$0xff]
        %v1867 = vld [vmem:[#allocation2 + $0xb8] sm:$0xff]
        %v1868 = vld [vmem:[#allocation2 + $0xc0] sm:$0xff]
        %v1869 = vld [vmem:[#allocation2 + $0xc8] sm:$0xff]
        %v1870 = vld [vmem:[#allocation2 + $0xd0] sm:$0xff]
        %v1871 = vld [vmem:[#allocation2 + $0xd8] sm:$0xff]
        %v1872 = vld [vmem:[#allocation2 + $0xe0] sm:$0xff]
        %v1873 = vld [vmem:[#allocation2 + $0xe8] sm:$0xff]
        %v1874 = vld [vmem:[#allocation2 + $0xf0] sm:$0xff]
        %v1875 = vld [vmem:[#allocation2 + $0xf8] sm:$0xff]
        %v1876 = vld [vmem:[#allocation2 + $0x100] sm:$0xff]
        %v1877 = vld [vmem:[#allocation2 + $0x108] sm:$0xff]
        %v1878 = vld [vmem:[#allocation2 + $0x110] sm:$0xff]
        %v1879 = vld [vmem:[#allocation2 + $0x118] sm:$0xff]
        %v1880 = vld [vmem:[%s4] sm:$0xff]
        %v1881 = vld [vmem:[%s4 + $0x8] sm:$0xff]
        %v1882 = vld [vmem:[%s4 + $0x10] sm:$0xff]
        %v1883 = vld [vmem:[%s4 + $0x18] sm:$0xff]
        %1885 = vset.pattern.permute.xlu0 0
        %1886 = vperm.xlu0 %1885, %v1880
        %v1887 = vpop.permute.xlu0 %1886
        %1890 = vset.pattern.permute.xlu0 0
        %1891 = vperm.xlu0 %1890, %v1881
        %v1892 = vpop.permute.xlu0 %1891
        %1895 = vset.pattern.permute.xlu0 0
        %1896 = vperm.xlu0 %1895, %v1882
        %v1897 = vpop.permute.xlu0 %1896
        %1900 = vset.pattern.permute.xlu0 0
        %1901 = vperm.xlu0 %1900, %v1883
        %v1902 = vpop.permute.xlu0 %1901
        %v1912 = vunpack.c.l.b16 %v1836
        %v1913 = vunpack.c.h.b16 %v1836
        %v1914 = vunpack.c.l.b16 %v1837
        %v1915 = vunpack.c.l.b16 %v1838
        %v1916 = vunpack.c.h.b16 %v1838
        %v1917 = vunpack.c.l.b16 %v1839
        %v1918 = vunpack.c.l.b16 %v1840
        %v1919 = vunpack.c.h.b16 %v1840
        %v1920 = vunpack.c.l.b16 %v1841
        %v1921 = vunpack.c.l.b16 %v1842
        %v1922 = vunpack.c.h.b16 %v1842
        %v1923 = vunpack.c.l.b16 %v1843
        %v1924 = vpack.c.b16 %v1915, %v1912
        %v1925 = vpack.c.b16 %v1916, %v1913
        %v1926 = vpack.c.b16 %v1917, %v1914
        %v1927 = vpack.c.b16 %v1921, %v1918
        %v1928 = vpack.c.b16 %v1922, %v1919
        %v1929 = vpack.c.b16 %v1923, %v1920
        %v1970 = vunpack.c.l.b16 %v1844
        %v1971 = vunpack.c.h.b16 %v1844
        %v1972 = vunpack.c.l.b16 %v1845
        %v1973 = vunpack.c.h.b16 %v1845
        %v1974 = vunpack.c.l.b16 %v1846
        %v1975 = vunpack.c.h.b16 %v1846
        %v1976 = vunpack.c.l.b16 %v1847
        %v1977 = vunpack.c.h.b16 %v1847
        %v1978 = vunpack.c.l.b16 %v1848
        %v1979 = vunpack.c.h.b16 %v1848
        %v1980 = vunpack.c.l.b16 %v1849
        %v1981 = vunpack.c.h.b16 %v1849
        %v1982 = vunpack.c.l.b16 %v1850
        %v1983 = vunpack.c.h.b16 %v1850
        %v1984 = vunpack.c.l.b16 %v1851
        %v1985 = vunpack.c.h.b16 %v1851
        %v1986 = vunpack.c.l.b16 %v1852
        %v1987 = vunpack.c.h.b16 %v1852
        %v1988 = vunpack.c.l.b16 %v1853
        %v1989 = vunpack.c.h.b16 %v1853
        %v1990 = vunpack.c.l.b16 %v1854
        %v1991 = vunpack.c.h.b16 %v1854
        %v1992 = vunpack.c.l.b16 %v1855
        %v1993 = vunpack.c.h.b16 %v1855
        %v1994 = vunpack.c.l.b16 %v1856
        %v1995 = vunpack.c.h.b16 %v1856
        %v1996 = vunpack.c.l.b16 %v1857
        %v1997 = vunpack.c.h.b16 %v1857
        %v1998 = vunpack.c.l.b16 %v1858
        %v1999 = vunpack.c.h.b16 %v1858
        %v2000 = vunpack.c.l.b16 %v1859
        %v2001 = vunpack.c.h.b16 %v1859
        %v2002 = vunpack.c.l.b16 %v1860
        %v2003 = vunpack.c.h.b16 %v1860
        %v2004 = vunpack.c.l.b16 %v1861
        %v2005 = vunpack.c.h.b16 %v1861
        %v2006 = vunpack.c.l.b16 %v1862
        %v2007 = vunpack.c.h.b16 %v1862
        %v2008 = vunpack.c.l.b16 %v1863
        %v2009 = vunpack.c.h.b16 %v1863
        %v2010 = vunpack.c.l.b16 %v1864
        %v2011 = vunpack.c.h.b16 %v1864
        %v2012 = vunpack.c.l.b16 %v1865
        %v2013 = vunpack.c.h.b16 %v1865
        %v2014 = vunpack.c.l.b16 %v1866
        %v2015 = vunpack.c.h.b16 %v1866
        %v2016 = vunpack.c.l.b16 %v1867
        %v2017 = vunpack.c.h.b16 %v1867
        %v2018 = vunpack.c.l.b16 %v1868
        %v2019 = vunpack.c.h.b16 %v1868
        %v2020 = vunpack.c.l.b16 %v1869
        %v2021 = vunpack.c.h.b16 %v1869
        %v2022 = vunpack.c.l.b16 %v1870
        %v2023 = vunpack.c.h.b16 %v1870
        %v2024 = vunpack.c.l.b16 %v1871
        %v2025 = vunpack.c.h.b16 %v1871
        %v2026 = vunpack.c.l.b16 %v1872
        %v2027 = vunpack.c.h.b16 %v1872
        %v2028 = vunpack.c.l.b16 %v1873
        %v2029 = vunpack.c.h.b16 %v1873
        %v2030 = vunpack.c.l.b16 %v1874
        %v2031 = vunpack.c.h.b16 %v1874
        %v2032 = vunpack.c.l.b16 %v1875
        %v2033 = vunpack.c.h.b16 %v1875
        %v2034 = vunpack.c.l.b16 %v1876
        %v2035 = vunpack.c.h.b16 %v1876
        %v2036 = vunpack.c.l.b16 %v1877
        %v2037 = vunpack.c.h.b16 %v1877
        %v2038 = vunpack.c.l.b16 %v1878
        %v2039 = vunpack.c.h.b16 %v1878
        %v2040 = vunpack.c.l.b16 %v1879
        %v2041 = vunpack.c.h.b16 %v1879
        %v2042 = vpack.c.b16 %v1972, %v1970
        %v2043 = vpack.c.b16 %v1973, %v1971
        %v2044 = vpack.c.b16 %v1976, %v1974
        %v2045 = vpack.c.b16 %v1977, %v1975
        %v2046 = vpack.c.b16 %v1980, %v1978
        %v2047 = vpack.c.b16 %v1981, %v1979
        %v2048 = vpack.c.b16 %v1984, %v1982
        %v2049 = vpack.c.b16 %v1985, %v1983
        %v2050 = vpack.c.b16 %v1988, %v1986
        %v2051 = vpack.c.b16 %v1989, %v1987
        %v2052 = vpack.c.b16 %v1992, %v1990
        %v2053 = vpack.c.b16 %v1993, %v1991
        %v2054 = vpack.c.b16 %v1996, %v1994
        %v2055 = vpack.c.b16 %v1997, %v1995
        %v2056 = vpack.c.b16 %v2000, %v1998
        %v2057 = vpack.c.b16 %v2001, %v1999
        %v2058 = vpack.c.b16 %v2004, %v2002
        %v2059 = vpack.c.b16 %v2005, %v2003
        %v2060 = vpack.c.b16 %v2008, %v2006
        %v2061 = vpack.c.b16 %v2009, %v2007
        %v2062 = vpack.c.b16 %v2012, %v2010
        %v2063 = vpack.c.b16 %v2013, %v2011
        %v2064 = vpack.c.b16 %v2016, %v2014
        %v2065 = vpack.c.b16 %v2017, %v2015
        %v2066 = vpack.c.b16 %v2020, %v2018
        %v2067 = vpack.c.b16 %v2021, %v2019
        %v2068 = vpack.c.b16 %v2024, %v2022
        %v2069 = vpack.c.b16 %v2025, %v2023
        %v2070 = vpack.c.b16 %v2028, %v2026
        %v2071 = vpack.c.b16 %v2029, %v2027
        %v2072 = vpack.c.b16 %v2032, %v2030
        %v2073 = vpack.c.b16 %v2033, %v2031
        %v2074 = vpack.c.b16 %v2036, %v2034
        %v2075 = vpack.c.b16 %v2037, %v2035
        %v2076 = vpack.c.b16 %v2040, %v2038
        %v2077 = vpack.c.b16 %v2041, %v2039
        %v2115 = vsel %vm1207, %v1926, 0
        %v2118 = vsel %vm1207, %v1929, 0
        %2120 = vmatprep.subr.bf16.mxu0 %v2057
        %2121 = vmatpush1.bf16.msra.mxu0 %v2056
        %2122 = vmatprep.subr.bf16.mxu0 %v2055
        %2123 = vmatpush1.bf16.msra.mxu0 %v2054
        %2124 = vmatprep.subr.bf16.mxu0 %v2053
        %2125 = vmatpush1.bf16.msra.mxu0 %v2052
        %2126 = vmatprep.subr.bf16.mxu0 %v2051
        %2127 = vmatpush1.bf16.msra.mxu0 %v2050
        %2128 = vmatprep.subr.bf16.mxu0 %v2049
        %2129 = vmatpush1.bf16.msra.mxu0 %v2048
        %2130 = vmatprep.subr.bf16.mxu0 %v2047
        %2131 = vmatpush1.bf16.msra.mxu0 %v2046
        %2132 = vmatprep.subr.bf16.mxu0 %v2045
        %2133 = vmatpush1.bf16.msra.mxu0 %v2044
        %2134 = vmatprep.subr.bf16.mxu0 %v2043
        %2135 = vmatpush1.bf16.msra.mxu0 %v2042
        %2136 = vmatprep.subr.bf16.mxu0 %v2073
        %2137 = vmatpush2.bf16.msra.mxu0 %v2072
        %2138 = vmatprep.subr.bf16.mxu0 %v2071
        %2139 = vmatpush2.bf16.msra.mxu0 %v2070
        %2140 = vmatprep.subr.bf16.mxu0 %v2069
        %2141 = vmatpush2.bf16.msra.mxu0 %v2068
        %2142 = vmatprep.subr.bf16.mxu0 %v2067
        %2143 = vmatpush2.bf16.msra.mxu0 %v2066
        %2144 = vmatprep.subr.bf16.mxu0 %v2065
        %2145 = vmatpush2.bf16.msra.mxu0 %v2064
        %2146 = vmatprep.subr.bf16.mxu0 %v2063
        %2147 = vmatpush2.bf16.msra.mxu0 %v2062
        %2148 = vmatprep.subr.bf16.mxu0 %v2061
        %2149 = vmatpush2.bf16.msra.mxu0 %v2060
        %2150 = vmatprep.subr.bf16.mxu0 %v2059
        %2151 = vmatpush2.bf16.msra.mxu0 %v2058
        %2152 = vmatprep.mubr.bf16.mxu0 %v1925
        %2153 = vmatmul.mubr.bf16.gmra.mxu0 %v1924
        %v2154 = vpop.f32.mrf.mxu0
        %v2155 = vadd.f32 %v1887, %v2154
        %v2156 = vpop.f32.mrf.mxu0
        %v2157 = vadd.f32 %v1887, %v2156
        %v2158 = vpop.f32.mrf.mxu0
        %v2159 = vadd.f32 %v1892, %v2158
        %v2160 = vpop.f32.mrf.mxu0
        %v2161 = vadd.f32 %v1892, %v2160
        %2162 = vmatprep.mubr.bf16.mxu0 %v1928
        %2163 = vmatmul.mubr.bf16.gmra.mxu0 %v1927
        %v2164 = vpop.f32.mrf.mxu0
        %v2165 = vadd.f32 %v1897, %v2164
        %v2166 = vpop.f32.mrf.mxu0
        %v2167 = vadd.f32 %v1897, %v2166
        %v2168 = vpop.f32.mrf.mxu0
        %v2169 = vadd.f32 %v1902, %v2168
        %v2170 = vpop.f32.mrf.mxu0
        %v2171 = vadd.f32 %v1902, %v2170
        %2172 = vdwg.mxu0
        %2173 = vmatprep.subr.bf16.mxu0 0
        %2174 = vmatpush1.bf16.msra.mxu0 0
        %2175 = vmatprep.subr.bf16.mxu0 0
        %2176 = vmatpush1.bf16.msra.mxu0 0
        %2177 = vmatprep.subr.bf16.mxu0 0
        %2178 = vmatpush1.bf16.msra.mxu0 0
        %2179 = vmatprep.subr.bf16.mxu0 0
        %2180 = vmatpush1.bf16.msra.mxu0 0
        %2181 = vmatprep.subr.bf16.mxu0 0
        %2182 = vmatpush1.bf16.msra.mxu0 0
        %2183 = vmatprep.subr.bf16.mxu0 0
        %2184 = vmatpush1.bf16.msra.mxu0 0
        %2185 = vmatprep.subr.bf16.mxu0 %v2077
        %2186 = vmatpush1.bf16.msra.mxu0 %v2076
        %2187 = vmatprep.subr.bf16.mxu0 %v2075
        %2188 = vmatpush1.bf16.msra.mxu0 %v2074
        %2189 = vmatprep.subr.bf16.mxu0 0
        %2190 = vmatpush2.bf16.msra.mxu0 0
        %2191 = vmatprep.subr.bf16.mxu0 0
        %2192 = vmatpush2.bf16.msra.mxu0 0
        %2193 = vmatprep.subr.bf16.mxu0 0
        %2194 = vmatpush2.bf16.msra.mxu0 0
        %2195 = vmatprep.subr.bf16.mxu0 0
        %2196 = vmatpush2.bf16.msra.mxu0 0
        %2197 = vmatprep.subr.bf16.mxu0 0
        %2198 = vmatpush2.bf16.msra.mxu0 0
        %2199 = vmatprep.subr.bf16.mxu0 0
        %2200 = vmatpush2.bf16.msra.mxu0 0
        %2201 = vmatprep.subr.bf16.mxu0 0
        %2202 = vmatpush2.bf16.msra.mxu0 0
        %2203 = vmatprep.subr.bf16.mxu0 0
        %2204 = vmatpush2.bf16.msra.mxu0 0
        %2205 = vmatprep.mubr.bf16.mxu0 0
        %2206 = vmatmul.mubr.bf16.gmra.mxu0 %v2115
        %v2207 = vpop.f32.mrf.mxu0
        %v2208 = vadd.f32 %v2155, %v2207
        %v2209 = vpop.f32.mrf.mxu0
        %v2210 = vadd.f32 %v2157, %v2209
        %v2211 = vpop.f32.mrf.mxu0
        %v2212 = vadd.f32 %v2159, %v2211
        %v2213 = vpop.f32.mrf.mxu0
        %v2214 = vadd.f32 %v2161, %v2213
        %2215 = vmatprep.mubr.bf16.mxu0 0
        %2216 = vmatmul.mubr.bf16.gmra.mxu0 %v2118
        %v2217 = vpop.f32.mrf.mxu0
        %v2218 = vadd.f32 %v2165, %v2217
        %v2219 = vpop.f32.mrf.mxu0
        %v2220 = vadd.f32 %v2167, %v2219
        %v2221 = vpop.f32.mrf.mxu0
        %v2222 = vadd.f32 %v2169, %v2221
        %v2223 = vpop.f32.mrf.mxu0
        %v2224 = vadd.f32 %v2171, %v2223
        %2225 = vdwg.mxu0
        %v2226 = vadd.f32 %v2208, %v2210
        %2227 = vadd.xlane.f32.xlu0 %v2226
        %v2228 = vpop.xlane.xlu0 %2227
        %v2229 = vadd.f32 %v2212, %v2214
        %2230 = vadd.xlane.f32.xlu0 %v2229
        %v2231 = vpop.xlane.xlu0 %2230
        %v2232 = vadd.f32 %v2218, %v2220
        %2233 = vadd.xlane.f32.xlu0 %v2232
        %v2234 = vpop.xlane.xlu0 %2233
        %v2235 = vadd.f32 %v2222, %v2224
        %2236 = vadd.xlane.f32.xlu0 %v2235
        %v2237 = vpop.xlane.xlu0 %2236
        %v2238 = vmul.f32 %v2228, 0.00390625
        %v2239 = vmul.f32 %v2231, 0.00390625
        %v2240 = vmul.f32 %v2234, 0.00390625
        %v2241 = vmul.f32 %v2237, 0.00390625
        %v2242 = vld [vmem:[%s5] sm:$0x3]
        %v2243 = vld [vmem:[%s6] sm:$0x3]
        %v2245 = vsel %vm1207, %v2242, 0
        %2247 = vmatprep.subr.mxu0 0.0
        %2248 = vmatpush1.msra.mxu0 0.0
        %2249 = vmatprep.subr.mxu0 0.0
        %2250 = vmatpush1.msra.mxu0 0.0
        %2251 = vmatprep.subr.mxu0 0.0
        %2252 = vmatpush1.msra.mxu0 0.0
        %2253 = vmatprep.subr.mxu0 0.0
        %2254 = vmatpush1.msra.mxu0 0.0
        %2255 = vmatprep.subr.mxu0 0.0
        %2256 = vmatpush1.msra.mxu0 0.0
        %2257 = vmatprep.subr.mxu0 0.0
        %2258 = vmatpush1.msra.mxu0 0.0
        %2259 = vmatprep.subr.mxu0 0.0
        %2260 = vmatpush1.msra.mxu0 0.0
        %2261 = vmatprep.subr.mxu0 0.0
        %2262 = vmatpush1.msra.mxu0 0.0
        %2263 = vmatprep.subr.mxu0 0.0
        %2264 = vmatpush1.msra.mxu0 0.0
        %2265 = vmatprep.subr.mxu0 0.0
        %2266 = vmatpush1.msra.mxu0 0.0
        %2267 = vmatprep.subr.mxu0 0.0
        %2268 = vmatpush1.msra.mxu0 0.0
        %2269 = vmatprep.subr.mxu0 0.0
        %2270 = vmatpush1.msra.mxu0 0.0
        %2271 = vmatprep.subr.mxu0 0.0
        %2272 = vmatpush1.msra.mxu0 %v2241
        %2273 = vmatprep.subr.mxu0 0.0
        %2274 = vmatpush1.msra.mxu0 %v2240
        %2275 = vmatprep.subr.mxu0 0.0
        %2276 = vmatpush1.msra.mxu0 %v2239
        %2277 = vmatprep.subr.mxu0 0.0
        %2278 = vmatpush1.msra.mxu0 %v2238
        %2279 = vmatprep.subr.mxu0 0.0
        %2280 = vmatpush2.msra.mxu0 0.0
        %2281 = vmatprep.subr.mxu0 0.0
        %2282 = vmatpush2.msra.mxu0 0.0
        %2283 = vmatprep.subr.mxu0 0.0
        %2284 = vmatpush2.msra.mxu0 0.0
        %2285 = vmatprep.subr.mxu0 0.0
        %2286 = vmatpush2.msra.mxu0 0.0
        %2287 = vmatprep.subr.mxu0 0.0
        %2288 = vmatpush2.msra.mxu0 0.0
        %2289 = vmatprep.subr.mxu0 0.0
        %2290 = vmatpush2.msra.mxu0 0.0
        %2291 = vmatprep.subr.mxu0 0.0
        %2292 = vmatpush2.msra.mxu0 0.0
        %2293 = vmatprep.subr.mxu0 0.0
        %2294 = vmatpush2.msra.mxu0 0.0
        %2295 = vmatprep.subr.mxu0 0.0
        %2296 = vmatpush2.msra.mxu0 0.0
        %2297 = vmatprep.subr.mxu0 0.0
        %2298 = vmatpush2.msra.mxu0 0.0
        %2299 = vmatprep.subr.mxu0 0.0
        %2300 = vmatpush2.msra.mxu0 0.0
        %2301 = vmatprep.subr.mxu0 0.0
        %2302 = vmatpush2.msra.mxu0 0.0
        %2303 = vmatprep.subr.mxu0 0.0
        %2304 = vmatpush2.msra.mxu0 0.0
        %2305 = vmatprep.subr.mxu0 0.0
        %2306 = vmatpush2.msra.mxu0 0.0
        %2307 = vmatprep.subr.mxu0 0.0
        %2308 = vmatpush2.msra.mxu0 0.0
        %2309 = vmatprep.subr.mxu0 0.0
        %2310 = vmatpush2.msra.mxu0 0.0
        %2311 = vmatprep.mubr.f32.mxu0 0.0
        %2312 = vmatmul.mubr.f32.gmra.mxu0 %v2245
        %v2313 = vpop.f32.mrf.mxu0
        %v2314 = vadd.f32 %v2243, %v2313
        %v2315 = vpop.f32.mrf.mxu0
        %2316 = vdwg.mxu0
        %v2317 = vmax.f32 %v2314, 0.0
        %v2318 = vld [vmem:[%s7] sm:$0xff]
        %v2319 = vld [vmem:[%s7 + $0x8] sm:$0xff]
        %v2320 = vld [vmem:[%s7 + $0x10] sm:$0xff]
        %v2321 = vld [vmem:[%s7 + $0x18] sm:$0xff]
        %v2322 = vld [vmem:[%s8] sm:$0xff]
        %v2323 = vld [vmem:[%s8 + $0x8] sm:$0xff]
        %v2324 = vld [vmem:[%s8 + $0x10] sm:$0xff]
        %v2325 = vld [vmem:[%s8 + $0x18] sm:$0xff]
        %vm2326 = vcmask 15360
        %v2328 = vsel %vm2326, %v2318, 0
        %v2331 = vsel %vm2326, %v2319, 0
        %v2334 = vsel %vm2326, %v2320, 0
        %v2337 = vsel %vm2326, %v2321, 0
        %vm2339 = vcmask 1041408
        %v2341 = vsel %vm2339, %v2317, 0
        %2343 = vmatprep.subr.mxu0 0.0
        %2344 = vmatpush1.msra.mxu0 0.0
        %2345 = vmatprep.subr.mxu0 0.0
        %2346 = vmatpush1.msra.mxu0 0.0
        %2347 = vmatprep.subr.mxu0 0.0
        %2348 = vmatpush1.msra.mxu0 0.0
        %2349 = vmatprep.subr.mxu0 0.0
        %2350 = vmatpush1.msra.mxu0 0.0
        %2351 = vmatprep.subr.mxu0 0.0
        %2352 = vmatpush1.msra.mxu0 0.0
        %2353 = vmatprep.subr.mxu0 0.0
        %2354 = vmatpush1.msra.mxu0 0.0
        %2355 = vmatprep.subr.mxu0 0.0
        %2356 = vmatpush1.msra.mxu0 0.0
        %2357 = vmatprep.subr.mxu0 0.0
        %2358 = vmatpush1.msra.mxu0 0.0
        %2359 = vmatprep.subr.mxu0 0.0
        %2360 = vmatpush1.msra.mxu0 0.0
        %2361 = vmatprep.subr.mxu0 0.0
        %2362 = vmatpush1.msra.mxu0 0.0
        %2363 = vmatprep.subr.mxu0 0.0
        %2364 = vmatpush1.msra.mxu0 0.0
        %2365 = vmatprep.subr.mxu0 0.0
        %2366 = vmatpush1.msra.mxu0 0.0
        %2367 = vmatprep.subr.mxu0 0.0
        %2368 = vmatpush1.msra.mxu0 0.0
        %2369 = vmatprep.subr.mxu0 0.0
        %2370 = vmatpush1.msra.mxu0 0.0
        %2371 = vmatprep.subr.mxu0 0.0
        %2372 = vmatpush1.msra.mxu0 0.0
        %2373 = vmatprep.subr.mxu0 0.0
        %2374 = vmatpush1.msra.mxu0 %v2341
        %2375 = vmatprep.subr.mxu0 0.0
        %2376 = vmatpush2.msra.mxu0 0.0
        %2377 = vmatprep.subr.mxu0 0.0
        %2378 = vmatpush2.msra.mxu0 0.0
        %2379 = vmatprep.subr.mxu0 0.0
        %2380 = vmatpush2.msra.mxu0 0.0
        %2381 = vmatprep.subr.mxu0 0.0
        %2382 = vmatpush2.msra.mxu0 0.0
        %2383 = vmatprep.subr.mxu0 0.0
        %2384 = vmatpush2.msra.mxu0 0.0
        %2385 = vmatprep.subr.mxu0 0.0
        %2386 = vmatpush2.msra.mxu0 0.0
        %2387 = vmatprep.subr.mxu0 0.0
        %2388 = vmatpush2.msra.mxu0 0.0
        %2389 = vmatprep.subr.mxu0 0.0
        %2390 = vmatpush2.msra.mxu0 0.0
        %2391 = vmatprep.subr.mxu0 0.0
        %2392 = vmatpush2.msra.mxu0 0.0
        %2393 = vmatprep.subr.mxu0 0.0
        %2394 = vmatpush2.msra.mxu0 0.0
        %2395 = vmatprep.subr.mxu0 0.0
        %2396 = vmatpush2.msra.mxu0 0.0
        %2397 = vmatprep.subr.mxu0 0.0
        %2398 = vmatpush2.msra.mxu0 0.0
        %2399 = vmatprep.subr.mxu0 0.0
        %2400 = vmatpush2.msra.mxu0 0.0
        %2401 = vmatprep.subr.mxu0 0.0
        %2402 = vmatpush2.msra.mxu0 0.0
        %2403 = vmatprep.subr.mxu0 0.0
        %2404 = vmatpush2.msra.mxu0 0.0
        %2405 = vmatprep.subr.mxu0 0.0
        %2406 = vmatpush2.msra.mxu0 0.0
        %2407 = vmatprep.mubr.f32.mxu0 0.0
        %2408 = vmatmul.mubr.f32.gmra.mxu0 %v2328
        %v2409 = vpop.f32.mrf.mxu0
        %v2410 = vadd.f32 %v2322, %v2409
        %v2411 = vpop.f32.mrf.mxu0
        %2412 = vmatprep.mubr.f32.mxu0 0.0
        %2413 = vmatmul.mubr.f32.gmra.mxu0 %v2331
        %v2414 = vpop.f32.mrf.mxu0
        %v2415 = vadd.f32 %v2323, %v2414
        %v2416 = vpop.f32.mrf.mxu0
        %2417 = vmatprep.mubr.f32.mxu0 0.0
        %2418 = vmatmul.mubr.f32.gmra.mxu0 %v2334
        %v2419 = vpop.f32.mrf.mxu0
        %v2420 = vadd.f32 %v2324, %v2419
        %v2421 = vpop.f32.mrf.mxu0
        %2422 = vmatprep.mubr.f32.mxu0 0.0
        %2423 = vmatmul.mubr.f32.gmra.mxu0 %v2337
        %v2424 = vpop.f32.mrf.mxu0
        %v2425 = vadd.f32 %v2325, %v2424
        %v2426 = vpop.f32.mrf.mxu0
        %2427 = vdwg.mxu0
        %v2428 = vxor.u32 %v2410, 2147483648
        %v2429 = vxor.u32 %v2415, 2147483648
        %v2430 = vxor.u32 %v2420, 2147483648
        %v2431 = vxor.u32 %v2425, 2147483648
        %v2432 = vmul.f32 %v2428, 1.442695
        %v2433 = vpow.pop %v2432
        %v2434 = vmul.f32 %v2429, 1.442695
        %v2435 = vpow.pop %v2434
        %v2436 = vmul.f32 %v2430, 1.442695
        %v2437 = vpow.pop %v2436
        %v2438 = vmul.f32 %v2431, 1.442695
        %v2439 = vpow.pop %v2438
        %v2440 = vadd.f32 %v2433, 1.0
        %v2441 = vadd.f32 %v2435, 1.0
        %v2442 = vadd.f32 %v2437, 1.0
        %v2443 = vadd.f32 %v2439, 1.0
        %v2444 = vrcp.pop %v2440
        %v2445 = vmul.f32 1.0, %v2444
        %v2446 = vrcp.pop %v2441
        %v2447 = vmul.f32 1.0, %v2446
        %v2448 = vrcp.pop %v2442
        %v2449 = vmul.f32 1.0, %v2448
        %v2450 = vrcp.pop %v2443
        %v2451 = vmul.f32 1.0, %v2450
        %2453 = vset.pattern.permute.xlu0 0
        %2454 = vperm.xlu0 %2453, %v2445
        %v2455 = vpop.permute.xlu0 %2454
        %2458 = vset.pattern.permute.xlu0 0
        %2459 = vperm.xlu0 %2458, %v2447
        %v2460 = vpop.permute.xlu0 %2459
        %2463 = vset.pattern.permute.xlu0 0
        %2464 = vperm.xlu0 %2463, %v2449
        %v2465 = vpop.permute.xlu0 %2464
        %2468 = vset.pattern.permute.xlu0 0
        %2469 = vperm.xlu0 %2468, %v2451
        %v2470 = vpop.permute.xlu0 %2469
        %v2472 = vmul.f32 %v2208, %v2455
        %v2473 = vmul.f32 %v2210, %v2455
        %v2474 = vmul.f32 %v2212, %v2460
        %v2475 = vmul.f32 %v2214, %v2460
        %v2476 = vmul.f32 %v2218, %v2465
        %v2477 = vmul.f32 %v2220, %v2465
        %v2478 = vmul.f32 %v2222, %v2470
        %v2479 = vmul.f32 %v2224, %v2470
        %v2480 = vld [vmem:[%s360] sm:$0xff]
        %v2481 = vld [vmem:[%s360 + $0x8] sm:$0xff]
        %v2482 = vld [vmem:[%s360 + $0x10] sm:$0xff]
        %v2483 = vld [vmem:[%s360 + $0x18] sm:$0xff]
        %v2484 = vld [vmem:[%s360 + $0x20] sm:$0xff]
        %v2485 = vld [vmem:[%s360 + $0x28] sm:$0xff]
        %v2486 = vld [vmem:[%s360 + $0x30] sm:$0xff]
        %v2487 = vld [vmem:[%s360 + $0x38] sm:$0xff]
        %v2488 = vadd.f32 %v2472, %v2480
        %v2489 = vadd.f32 %v2473, %v2481
        %v2490 = vadd.f32 %v2474, %v2482
        %v2491 = vadd.f32 %v2475, %v2483
        %v2492 = vadd.f32 %v2476, %v2484
        %v2493 = vadd.f32 %v2477, %v2485
        %v2494 = vadd.f32 %v2478, %v2486
        %v2495 = vadd.f32 %v2479, %v2487
        %2496 = vst [vmem:[%s355] sm:$0xff] %v2488
        %2497 = vst [vmem:[%s355 + $0x8] sm:$0xff] %v2489
        %2498 = vst [vmem:[%s355 + $0x10] sm:$0xff] %v2490
        %2499 = vst [vmem:[%s355 + $0x18] sm:$0xff] %v2491
        %2500 = vst [vmem:[%s355 + $0x20] sm:$0xff] %v2492
        %2501 = vst [vmem:[%s355 + $0x28] sm:$0xff] %v2493
        %2502 = vst [vmem:[%s355 + $0x30] sm:$0xff] %v2494
        %2503 = vst [vmem:[%s355 + $0x38] sm:$0xff] %v2495
        %s2504 = sand.u32 %s227, 1
        %s2505 = scalar_lea.sflag [#allocation5], %s2504
        %s2506 = sand.u32 %s227, 1
        %s2507 = smul.addr %s2506, 64
        %s2508 = scalar_lea.vmem [#allocation8], %s2507
        // Predicated region
        $region65: #{tpu_custom_call.1} parent=55 // pred_check
          %p2509 = pneg %p237
        $region66: #{tpu_custom_call.1} parent=55 // pred_check_branch
          %2511 = sbr.rel (%p2509) target = $region68
        $region67: #{tpu_custom_call.1} parent=55 // pred_region
          %s2513 = ssub.s32 1024, 1024
          %2514 = vsyncadd %s2505, %s2513
          %s2515 = smul.addr %s25, 8
          %s2516 = smul.addr %s2515, 128
          %s2517 = scalar_lea.hbm %s9, %s2516
          %s2518 = sshll.u32 %s2508, 4
          %s2519 = int_to_ptr.vmem [resolvable:$true] %s2518
          %2524 = dma.vmem_to_hbm [thread:$0]  %s2519, 1024, %s2517, %s2505, 256, 256, 16
        $region68: #{tpu_custom_call.1} parent=55 // pred_fallthru
          _
      $region56: #{tpu_custom_call.1} parent=5 // pred_fallthru
        _
      %p2525 = scmp.le.s32.totalorder 2, %s20
      // Predicated region
      $region69: #{tpu_custom_call.1} parent=5 // pred_check
        %p2526 = pneg %p2525
      $region70: #{tpu_custom_call.1} parent=5 // pred_check_branch
        %2528 = sbr.rel (%p2526) target = $region72
      $region71: #{tpu_custom_call.1} parent=5 // pred_region
        %s2529 = ssub.s32 %s20, 2
        // Predicated region
        $region73: #{tpu_custom_call.1} parent=71 // pred_check
          %p2530 = pneg %p243
        $region74: #{tpu_custom_call.1} parent=71 // pred_check_branch
          %2532 = sbr.rel (%p2530) target = $region76
        $region75: #{tpu_custom_call.1} parent=71 // pred_region
          %s2533 = sand.u32 %s228, 1
          %s2534 = scalar_lea.sflag [#allocation5], %s2533
          %s2535 = sand.u32 %s228, 1
          %s2536 = smul.addr %s2535, 64
          %s2537 = scalar_lea.vmem [#allocation8], %s2536
          %2538 = dma.done %s2534, 1024
        $region76: #{tpu_custom_call.1} parent=71 // pred_fallthru
          _
      $region72: #{tpu_custom_call.1} parent=5 // pred_fallthru
        _
    $region6: #{tpu_custom_call.1} parent=1 // loop_footer
      %s24 = sadd.s32 1, %s20
    $region7: #{tpu_custom_call.1} parent=1 // loop_footer_branch
      %19 = sbr.rel target = $region3
    $region8: #{tpu_custom_call.1} parent=1 // loop_exit
      _
    %2539 = vsyncpa [#allocation4], 1
    %s2540 = scalar_lea.sflag [#allocation4], 1
    %2541 = vsyncpa %s2540, 1
    %2542 = vsyncpa [#allocation7], 1
    %2543 = vsyncpa [#allocation5], 1
    %s2544 = scalar_lea.sflag [#allocation5], 1
    %2545 = vsyncpa %s2544, 1

</llo_original>
